<compile_context>
chip_gen: v5e
topology: v5e:2x2
jax: 0.10.0
libtpu: 0.0.40
codegen_flags: <defaults>
</compile_context>

<pallas_src>
import functools

import jax
import jax.numpy as jnp
from jax.experimental import pallas as pl
from jax.experimental.pallas import tpu as pltpu


def _gru_encoder_kernel(emb_ref, h0_ref, w_ih0_ref, w_hh0_ref, b0_ref,
                        w_cat_ref, b_cat_ref, states_ref,
                        *, num_layers, hidden, seq_len, batch_pad):
    """Whole multi-layer GRU sequence in a single kernel invocation.

    Packed gate layout (4H columns): [ rz (2H) | n_ih (H) | n_hh (H) ].
    """
    L, H, S, B = num_layers, hidden, seq_len, batch_pad

    # Hoisted layer-0 input projection for ALL timesteps (state independent):
    # (S*B, E) @ (E, 4H) + packed biases.
    gi0 = jnp.dot(emb_ref[...], w_ih0_ref[...],
                  preferred_element_type=jnp.float32) + b0_ref[...]

    # Load weights / initial state once (hoisted out of the time loop).
    w_hh0 = w_hh0_ref[...]                                    # (H, 4H)
    w_cat = [w_cat_ref[l - 1] for l in range(1, L)]           # each (2H, 4H)
    b_cat = [b_cat_ref[l - 1:l, :] for l in range(1, L)]      # each (1, 4H)
    h = [h0_ref[l] for l in range(L)]                         # each (B, H)

    def gates_to_h(gates, h_prev):
        # PyTorch GRU: r,z = sigmoid(gi_rz + gh_rz); n = tanh(gi_n + r * gh_n)
        rz = jax.nn.sigmoid(gates[:, :2 * H])
        r = rz[:, :H]
        z = rz[:, H:]
        n = jnp.tanh(gates[:, 2 * H:3 * H] + r * gates[:, 3 * H:])
        return (1.0 - z) * n + z * h_prev

    # Fully-unrolled static time loop (S small & static): all-static indices,
    # recurrent state carried as values, no per-step grid transitions.
    for t in range(S):
        # Layer 0: only the hh matmul sits on the critical path.
        gates = gi0[t * B:(t + 1) * B, :] + jnp.dot(
            h[0], w_hh0, preferred_element_type=jnp.float32)
        h[0] = gates_to_h(gates, h[0])
        states_ref[t, 0, :, :] = h[0]
        x = h[0]
        # Layers >= 1: single fused [x | h] @ W_cat matmul per step.
        for l in range(1, L):
            xh = jnp.concatenate([x, h[l]], axis=1)            # (B, 2H)
            gates = jnp.dot(xh, w_cat[l - 1],
                            preferred_element_type=jnp.float32) + b_cat[l - 1]
            h[l] = gates_to_h(gates, h[l])
            states_ref[t, l, :, :] = h[l]
            x = h[l]


def _pack_gru_weights(params, L, H, E):
    """Pack PyTorch-layout GRU weights into the fused 4H-column kernel layout."""
    w_ih0 = params["w_ih0"]                    # (E, 3H)
    w_hh = params["w_hh"]                      # (L, H, 3H)
    b_ih = params["b_ih"]                      # (L, 3H)
    b_hh = params["b_hh"]                      # (L, 3H)
    f32 = jnp.float32
    zE = jnp.zeros((E, H), f32)
    zH = jnp.zeros((H, H), f32)

    # Layer 0: gi path gets [rz | n | 0], hh path gets [rz | 0 | n].
    w_ih0_4 = jnp.concatenate([w_ih0[:, :2 * H], w_ih0[:, 2 * H:], zE], axis=1)
    w_hh0_4 = jnp.concatenate([w_hh[0][:, :2 * H], zH, w_hh[0][:, 2 * H:]], axis=1)
    b0_4 = jnp.concatenate([b_ih[0, :2 * H] + b_hh[0, :2 * H],
                            b_ih[0, 2 * H:], b_hh[0, 2 * H:]])[None, :]

    # Layers >= 1: one (2H, 4H) matrix with x rows on top, h rows below.
    w_cats, b_cats = [], []
    for l in range(1, L):
        w_i = params["w_ih_rest"][l - 1]       # (H, 3H)
        w_h = w_hh[l]                          # (H, 3H)
        top = jnp.concatenate([w_i[:, :2 * H], w_i[:, 2 * H:], zH], axis=1)
        bot = jnp.concatenate([w_h[:, :2 * H], zH, w_h[:, 2 * H:]], axis=1)
        w_cats.append(jnp.concatenate([top, bot], axis=0))
        b_cats.append(jnp.concatenate([b_ih[l, :2 * H] + b_hh[l, :2 * H],
                                       b_ih[l, 2 * H:], b_hh[l, 2 * H:]]))
    if w_cats:
        w_cat = jnp.stack(w_cats, axis=0)
        b_cat = jnp.stack(b_cats, axis=0)
    else:  # L == 1: unused dummies (never indexed in the kernel)
        w_cat = jnp.zeros((1, 2 * H, 4 * H), f32)
        b_cat = jnp.zeros((1, 4 * H), f32)
    return w_ih0_4, w_hh0_4, b0_4, w_cat, b_cat


def encoder_forward(source_batch, encoder_curr_state, params):
    """Mirrors Encoder.forward: returns (encoderStates (S,L,B,H), encoderCurrState (L,B,H))."""
    emb_table = params["embedding"]            # (vocab, E)
    B, S = source_batch.shape
    L, _, H = encoder_curr_state.shape
    E = emb_table.shape[1]

    # Pad batch to a sublane multiple (8); padded rows are independent & discarded.
    B_pad = ((B + 7) // 8) * 8

    # Embedding lookup (gather) in plain JAX, time-major, flattened to (S*B_pad, E)
    # so the layer-0 projection is one big matmul inside the kernel.
    emb = jnp.transpose(emb_table[source_batch], (1, 0, 2)).astype(jnp.float32)   # (S, B, E)
    h0 = encoder_curr_state.astype(jnp.float32)                                    # (L, B, H)
    if B_pad != B:
        emb = jnp.pad(emb, ((0, 0), (0, B_pad - B), (0, 0)))
        h0 = jnp.pad(h0, ((0, 0), (0, B_pad - B), (0, 0)))
    emb_flat = emb.reshape(S * B_pad, E)

    w_ih0_4, w_hh0_4, b0_4, w_cat, b_cat = _pack_gru_weights(params, L, H, E)

    kernel = functools.partial(_gru_encoder_kernel, num_layers=L, hidden=H,
                               seq_len=S, batch_pad=B_pad)

    # Single invocation: every operand mapped whole into VMEM (everything is tiny;
    # no grid -> no pipelining / double-buffering of constant weights).
    vmem_spec = pl.BlockSpec(memory_space=pltpu.MemorySpace.VMEM)
    states_pad = pl.pallas_call(
        kernel,
        out_shape=jax.ShapeDtypeStruct((S, L, B_pad, H), jnp.float32),
        in_specs=[vmem_spec] * 7,
        out_specs=vmem_spec,
    )(emb_flat, h0, w_ih0_4, w_hh0_4, b0_4, w_cat, b_cat)

    states = states_pad[:, :, :B, :]
    h_final = states[-1]            # GRU: encoderCurrState == encoderStates[-1]
    return states, h_final


def _gru_reference(emb_seq, h0, params, hidden):
    """Pure-JAX reference mirroring the PyTorch per-step loop (original layout)."""
    H = hidden
    S = emb_seq.shape[0]
    L = h0.shape[0]

    def cell(x, h, w_ih, w_hh, b_i, b_h):
        gi = x @ w_ih + b_i
        gh = h @ w_hh + b_h
        r = jax.nn.sigmoid(gi[:, :H] + gh[:, :H])
        z = jax.nn.sigmoid(gi[:, H:2 * H] + gh[:, H:2 * H])
        n = jnp.tanh(gi[:, 2 * H:] + r * gh[:, 2 * H:])
        return (1.0 - z) * n + z * h

    h = h0
    all_states = []
    for t in range(S):
        x = emb_seq[t]
        new_layers = []
        for l in range(L):
            w_ih = params["w_ih0"] if l == 0 else params["w_ih_rest"][l - 1]
            h_new = cell(x, h[l], w_ih, params["w_hh"][l],
                         params["b_ih"][l], params["b_hh"][l])
            new_layers.append(h_new)
            x = h_new
        h = jnp.stack(new_layers, axis=0)
        all_states.append(h)
    return jnp.stack(all_states, axis=0), h


def make_params(key, vocab, emb_size, hidden, num_layers):
    """Deterministic parameter init (PyTorch-style shapes, GRU gate order r,z,n)."""
    keys = jax.random.split(key, 5 + num_layers)
    k = 1.0 / jnp.sqrt(jnp.float32(hidden))
    params = {}
    params["embedding"] = jax.random.normal(keys[0], (vocab, emb_size), jnp.float32)
    params["w_ih0"] = jax.random.uniform(keys[1], (emb_size, 3 * hidden), jnp.float32, -k, k)
    rest = []
    for l in range(1, num_layers):
        rest.append(jax.random.uniform(keys[1 + l], (hidden, 3 * hidden), jnp.float32, -k, k))
    if rest:
        params["w_ih_rest"] = jnp.stack(rest, axis=0)
    else:
        params["w_ih_rest"] = jnp.zeros((1, hidden, 3 * hidden), jnp.float32)  # unused dummy
    params["w_hh"] = jax.random.uniform(keys[1 + num_layers],
                                        (num_layers, hidden, 3 * hidden), jnp.float32, -k, k)
    params["b_ih"] = jax.random.uniform(keys[2 + num_layers],
                                        (num_layers, 3 * hidden), jnp.float32, -k, k)
    params["b_hh"] = jax.random.uniform(keys[3 + num_layers],
                                        (num_layers, 3 * hidden), jnp.float32, -k, k)
    return params


if __name__ == "__main__":
    # Small config consistent with the module's __init__:
    #   inputDim (vocab)=20, embSize=16, encoderLayers=2, hiddenLayerNuerons=32,
    #   cellType='GRU', batch_size=4, sequence length=8.
    VOCAB, E, L, H, B, S = 20, 16, 2, 32, 4, 8

    key = jax.random.PRNGKey(0)
    pkey, dkey = jax.random.split(key)
    params = make_params(pkey, VOCAB, E, H, L)

    source_batch = jax.random.randint(dkey, (B, S), 0, VOCAB, dtype=jnp.int32)
    init_state = jnp.zeros((L, B, H), jnp.float32)  # Encoder.getInitialState()

    fwd = jax.jit(encoder_forward)
    states, h_final = fwd(source_batch, init_state, params)
    jax.block_until_ready((states, h_final))

    # Correctness check vs. pure-JAX reference of the PyTorch loop.
    emb_seq = jnp.transpose(params["embedding"][source_batch], (1, 0, 2))
    ref_states, ref_final = _gru_reference(emb_seq, init_state, params, H)
    assert states.shape == (S, L, B, H) and h_final.shape == (L, B, H)
    assert jnp.allclose(states, ref_states, atol=1e-4, rtol=1e-4)
    assert jnp.allclose(h_final, ref_final, atol=1e-4, rtol=1e-4)

    print("KERNEL_OK")
</pallas_src>

<mosaic_0001>
module attributes {stable_mosaic.version = 11 : i64} {
  func.func @_gru_encoder_kernel(%arg0: memref<64x16xf32, #tpu.memory_space<vmem>>, %arg1: memref<2x8x32xf32, #tpu.memory_space<vmem>>, %arg2: memref<16x128xf32, #tpu.memory_space<vmem>>, %arg3: memref<32x128xf32, #tpu.memory_space<vmem>>, %arg4: memref<1x128xf32, #tpu.memory_space<vmem>>, %arg5: memref<1x64x128xf32, #tpu.memory_space<vmem>>, %arg6: memref<1x128xf32, #tpu.memory_space<vmem>>, %arg7: memref<8x2x8x32xf32, #tpu.memory_space<vmem>>) attributes {dimension_semantics = [], scalar_prefetch = 0 : i64, scratch_operands = 0 : i64, tpu.core_type = #tpu.core_type<tc>} {
    %c0 = arith.constant 0 : index
    %c0_0 = arith.constant 0 : index
    %0 = vector.load %arg0[%c0, %c0_0] : memref<64x16xf32, #tpu.memory_space<vmem>>, vector<64x16xf32>
    %c0_1 = arith.constant 0 : index
    %c0_2 = arith.constant 0 : index
    %1 = vector.load %arg2[%c0_1, %c0_2] : memref<16x128xf32, #tpu.memory_space<vmem>>, vector<16x128xf32>
    %cst = arith.constant dense<0.000000e+00> : vector<64x128xf32>
    %2 = tpu.matmul %0, %1, %cst {dimension_numbers = #tpu.dot_dimension_numbers<[1], [0], [0], [1], [0, 0, 1, 1], [], []>} : vector<64x16xf32>, vector<16x128xf32>, vector<64x128xf32> -> vector<64x128xf32>
    %c0_3 = arith.constant 0 : index
    %c0_4 = arith.constant 0 : index
    %3 = vector.load %arg4[%c0_3, %c0_4] : memref<1x128xf32, #tpu.memory_space<vmem>>, vector<1x128xf32>
    %4 = vector.broadcast %3 : vector<1x128xf32> to vector<64x128xf32>
    %5 = arith.addf %2, %4 : vector<64x128xf32>
    %c0_5 = arith.constant 0 : index
    %c0_6 = arith.constant 0 : index
    %6 = vector.load %arg3[%c0_5, %c0_6] : memref<32x128xf32, #tpu.memory_space<vmem>>, vector<32x128xf32>
    %c0_7 = arith.constant 0 : index
    %c0_8 = arith.constant 0 : index
    %c0_9 = arith.constant 0 : index
    %7 = vector.load %arg5[%c0_7, %c0_8, %c0_9] : memref<1x64x128xf32, #tpu.memory_space<vmem>>, vector<1x64x128xf32>
    %8 = vector.shape_cast %7 : vector<1x64x128xf32> to vector<64x128xf32>
    %c0_10 = arith.constant 0 : index
    %c0_11 = arith.constant 0 : index
    %9 = vector.load %arg6[%c0_10, %c0_11] : memref<1x128xf32, #tpu.memory_space<vmem>>, vector<1x128xf32>
    %c0_12 = arith.constant 0 : index
    %c0_13 = arith.constant 0 : index
    %c0_14 = arith.constant 0 : index
    %10 = vector.load %arg1[%c0_12, %c0_13, %c0_14] : memref<2x8x32xf32, #tpu.memory_space<vmem>>, vector<1x8x32xf32>
    %11 = vector.shape_cast %10 : vector<1x8x32xf32> to vector<8x32xf32>
    %c1 = arith.constant 1 : index
    %c0_15 = arith.constant 0 : index
    %c0_16 = arith.constant 0 : index
    %12 = vector.load %arg1[%c1, %c0_15, %c0_16] : memref<2x8x32xf32, #tpu.memory_space<vmem>>, vector<1x8x32xf32>
    %13 = vector.shape_cast %12 : vector<1x8x32xf32> to vector<8x32xf32>
    %14 = vector.extract_strided_slice %5 {offsets = [0, 0], sizes = [8, 128], strides = [1, 1]} : vector<64x128xf32> to vector<8x128xf32>
    %cst_17 = arith.constant dense<0.000000e+00> : vector<8x128xf32>
    %15 = tpu.matmul %11, %6, %cst_17 {dimension_numbers = #tpu.dot_dimension_numbers<[1], [0], [0], [1], [0, 0, 1, 1], [], []>} : vector<8x32xf32>, vector<32x128xf32>, vector<8x128xf32> -> vector<8x128xf32>
    %16 = arith.addf %14, %15 : vector<8x128xf32>
    %17 = vector.extract_strided_slice %16 {offsets = [0, 0], sizes = [8, 64], strides = [1, 1]} : vector<8x128xf32> to vector<8x64xf32>
    %18 = arith.negf %17 : vector<8x64xf32>
    %19 = math.exp %18 : vector<8x64xf32>
    %cst_18 = arith.constant 1.000000e+00 : f32
    %20 = vector.broadcast %cst_18 : f32 to vector<8x64xf32>
    %21 = arith.addf %20, %19 : vector<8x64xf32>
    %22 = arith.divf %20, %21 : vector<8x64xf32>
    %23 = vector.extract_strided_slice %22 {offsets = [0, 0], sizes = [8, 32], strides = [1, 1]} : vector<8x64xf32> to vector<8x32xf32>
    %24 = vector.extract_strided_slice %22 {offsets = [0, 32], sizes = [8, 32], strides = [1, 1]} : vector<8x64xf32> to vector<8x32xf32>
    %25 = vector.extract_strided_slice %16 {offsets = [0, 64], sizes = [8, 32], strides = [1, 1]} : vector<8x128xf32> to vector<8x32xf32>
    %26 = vector.extract_strided_slice %16 {offsets = [0, 96], sizes = [8, 32], strides = [1, 1]} : vector<8x128xf32> to vector<8x32xf32>
    %27 = arith.mulf %23, %26 : vector<8x32xf32>
    %28 = arith.addf %25, %27 : vector<8x32xf32>
    %29 = math.tanh %28 : vector<8x32xf32>
    %cst_19 = arith.constant 1.000000e+00 : f32
    %30 = vector.broadcast %cst_19 : f32 to vector<8x32xf32>
    %31 = arith.subf %30, %24 : vector<8x32xf32>
    %32 = arith.mulf %31, %29 : vector<8x32xf32>
    %33 = arith.mulf %24, %11 : vector<8x32xf32>
    %34 = arith.addf %32, %33 : vector<8x32xf32>
    %c0_20 = arith.constant 0 : index
    %c0_21 = arith.constant 0 : index
    %c0_22 = arith.constant 0 : index
    %c0_23 = arith.constant 0 : index
    %35 = vector.load %arg7[%c0_20, %c0_21, %c0_22, %c0_23] : memref<8x2x8x32xf32, #tpu.memory_space<vmem>>, vector<1x1x8x32xf32>
    %36 = vector.shape_cast %35 : vector<1x1x8x32xf32> to vector<8x32xf32>
    %37 = vector.shape_cast %34 : vector<8x32xf32> to vector<1x1x8x32xf32>
    tpu.vector_store %arg7[%c0_20, %c0_21, %c0_22, %c0_23], %37 {strides = array<i32>} : memref<8x2x8x32xf32, #tpu.memory_space<vmem>>, vector<1x1x8x32xf32>,
    %38 = tpu.concatenate %34, %13 in 1 : vector<8x32xf32>, vector<8x32xf32> -> vector<8x64xf32>
    %cst_24 = arith.constant dense<0.000000e+00> : vector<8x128xf32>
    %39 = tpu.matmul %38, %8, %cst_24 {dimension_numbers = #tpu.dot_dimension_numbers<[1], [0], [0], [1], [0, 0, 1, 1], [], []>} : vector<8x64xf32>, vector<64x128xf32>, vector<8x128xf32> -> vector<8x128xf32>
    %40 = vector.broadcast %9 : vector<1x128xf32> to vector<8x128xf32>
    %41 = arith.addf %39, %40 : vector<8x128xf32>
    %42 = vector.extract_strided_slice %41 {offsets = [0, 0], sizes = [8, 64], strides = [1, 1]} : vector<8x128xf32> to vector<8x64xf32>
    %43 = arith.negf %42 : vector<8x64xf32>
    %44 = math.exp %43 : vector<8x64xf32>
    %cst_25 = arith.constant 1.000000e+00 : f32
    %45 = vector.broadcast %cst_25 : f32 to vector<8x64xf32>
    %46 = arith.addf %45, %44 : vector<8x64xf32>
    %47 = arith.divf %45, %46 : vector<8x64xf32>
    %48 = vector.extract_strided_slice %47 {offsets = [0, 0], sizes = [8, 32], strides = [1, 1]} : vector<8x64xf32> to vector<8x32xf32>
    %49 = vector.extract_strided_slice %47 {offsets = [0, 32], sizes = [8, 32], strides = [1, 1]} : vector<8x64xf32> to vector<8x32xf32>
    %50 = vector.extract_strided_slice %41 {offsets = [0, 64], sizes = [8, 32], strides = [1, 1]} : vector<8x128xf32> to vector<8x32xf32>
    %51 = vector.extract_strided_slice %41 {offsets = [0, 96], sizes = [8, 32], strides = [1, 1]} : vector<8x128xf32> to vector<8x32xf32>
    %52 = arith.mulf %48, %51 : vector<8x32xf32>
    %53 = arith.addf %50, %52 : vector<8x32xf32>
    %54 = math.tanh %53 : vector<8x32xf32>
    %cst_26 = arith.constant 1.000000e+00 : f32
    %55 = vector.broadcast %cst_26 : f32 to vector<8x32xf32>
    %56 = arith.subf %55, %49 : vector<8x32xf32>
    %57 = arith.mulf %56, %54 : vector<8x32xf32>
    %58 = arith.mulf %49, %13 : vector<8x32xf32>
    %59 = arith.addf %57, %58 : vector<8x32xf32>
    %c0_27 = arith.constant 0 : index
    %c1_28 = arith.constant 1 : index
    %c0_29 = arith.constant 0 : index
    %c0_30 = arith.constant 0 : index
    %60 = vector.load %arg7[%c0_27, %c1_28, %c0_29, %c0_30] : memref<8x2x8x32xf32, #tpu.memory_space<vmem>>, vector<1x1x8x32xf32>
    %61 = vector.shape_cast %60 : vector<1x1x8x32xf32> to vector<8x32xf32>
    %62 = vector.shape_cast %59 : vector<8x32xf32> to vector<1x1x8x32xf32>
    tpu.vector_store %arg7[%c0_27, %c1_28, %c0_29, %c0_30], %62 {strides = array<i32>} : memref<8x2x8x32xf32, #tpu.memory_space<vmem>>, vector<1x1x8x32xf32>,
    %63 = vector.extract_strided_slice %5 {offsets = [8, 0], sizes = [8, 128], strides = [1, 1]} : vector<64x128xf32> to vector<8x128xf32>
    %cst_31 = arith.constant dense<0.000000e+00> : vector<8x128xf32>
    %64 = tpu.matmul %34, %6, %cst_31 {dimension_numbers = #tpu.dot_dimension_numbers<[1], [0], [0], [1], [0, 0, 1, 1], [], []>} : vector<8x32xf32>, vector<32x128xf32>, vector<8x128xf32> -> vector<8x128xf32>
    %65 = arith.addf %63, %64 : vector<8x128xf32>
    %66 = vector.extract_strided_slice %65 {offsets = [0, 0], sizes = [8, 64], strides = [1, 1]} : vector<8x128xf32> to vector<8x64xf32>
    %67 = arith.negf %66 : vector<8x64xf32>
    %68 = math.exp %67 : vector<8x64xf32>
    %cst_32 = arith.constant 1.000000e+00 : f32
    %69 = vector.broadcast %cst_32 : f32 to vector<8x64xf32>
    %70 = arith.addf %69, %68 : vector<8x64xf32>
    %71 = arith.divf %69, %70 : vector<8x64xf32>
    %72 = vector.extract_strided_slice %71 {offsets = [0, 0], sizes = [8, 32], strides = [1, 1]} : vector<8x64xf32> to vector<8x32xf32>
    %73 = vector.extract_strided_slice %71 {offsets = [0, 32], sizes = [8, 32], strides = [1, 1]} : vector<8x64xf32> to vector<8x32xf32>
    %74 = vector.extract_strided_slice %65 {offsets = [0, 64], sizes = [8, 32], strides = [1, 1]} : vector<8x128xf32> to vector<8x32xf32>
    %75 = vector.extract_strided_slice %65 {offsets = [0, 96], sizes = [8, 32], strides = [1, 1]} : vector<8x128xf32> to vector<8x32xf32>
    %76 = arith.mulf %72, %75 : vector<8x32xf32>
    %77 = arith.addf %74, %76 : vector<8x32xf32>
    %78 = math.tanh %77 : vector<8x32xf32>
    %cst_33 = arith.constant 1.000000e+00 : f32
    %79 = vector.broadcast %cst_33 : f32 to vector<8x32xf32>
    %80 = arith.subf %79, %73 : vector<8x32xf32>
    %81 = arith.mulf %80, %78 : vector<8x32xf32>
    %82 = arith.mulf %73, %34 : vector<8x32xf32>
    %83 = arith.addf %81, %82 : vector<8x32xf32>
    %c1_34 = arith.constant 1 : index
    %c0_35 = arith.constant 0 : index
    %c0_36 = arith.constant 0 : index
    %c0_37 = arith.constant 0 : index
    %84 = vector.load %arg7[%c1_34, %c0_35, %c0_36, %c0_37] : memref<8x2x8x32xf32, #tpu.memory_space<vmem>>, vector<1x1x8x32xf32>
    %85 = vector.shape_cast %84 : vector<1x1x8x32xf32> to vector<8x32xf32>
    %86 = vector.shape_cast %83 : vector<8x32xf32> to vector<1x1x8x32xf32>
    tpu.vector_store %arg7[%c1_34, %c0_35, %c0_36, %c0_37], %86 {strides = array<i32>} : memref<8x2x8x32xf32, #tpu.memory_space<vmem>>, vector<1x1x8x32xf32>,
    %87 = tpu.concatenate %83, %59 in 1 : vector<8x32xf32>, vector<8x32xf32> -> vector<8x64xf32>
    %cst_38 = arith.constant dense<0.000000e+00> : vector<8x128xf32>
    %88 = tpu.matmul %87, %8, %cst_38 {dimension_numbers = #tpu.dot_dimension_numbers<[1], [0], [0], [1], [0, 0, 1, 1], [], []>} : vector<8x64xf32>, vector<64x128xf32>, vector<8x128xf32> -> vector<8x128xf32>
    %89 = vector.broadcast %9 : vector<1x128xf32> to vector<8x128xf32>
    %90 = arith.addf %88, %89 : vector<8x128xf32>
    %91 = vector.extract_strided_slice %90 {offsets = [0, 0], sizes = [8, 64], strides = [1, 1]} : vector<8x128xf32> to vector<8x64xf32>
    %92 = arith.negf %91 : vector<8x64xf32>
    %93 = math.exp %92 : vector<8x64xf32>
    %cst_39 = arith.constant 1.000000e+00 : f32
    %94 = vector.broadcast %cst_39 : f32 to vector<8x64xf32>
    %95 = arith.addf %94, %93 : vector<8x64xf32>
    %96 = arith.divf %94, %95 : vector<8x64xf32>
    %97 = vector.extract_strided_slice %96 {offsets = [0, 0], sizes = [8, 32], strides = [1, 1]} : vector<8x64xf32> to vector<8x32xf32>
    %98 = vector.extract_strided_slice %96 {offsets = [0, 32], sizes = [8, 32], strides = [1, 1]} : vector<8x64xf32> to vector<8x32xf32>
    %99 = vector.extract_strided_slice %90 {offsets = [0, 64], sizes = [8, 32], strides = [1, 1]} : vector<8x128xf32> to vector<8x32xf32>
    %100 = vector.extract_strided_slice %90 {offsets = [0, 96], sizes = [8, 32], strides = [1, 1]} : vector<8x128xf32> to vector<8x32xf32>
    %101 = arith.mulf %97, %100 : vector<8x32xf32>
    %102 = arith.addf %99, %101 : vector<8x32xf32>
    %103 = math.tanh %102 : vector<8x32xf32>
    %cst_40 = arith.constant 1.000000e+00 : f32
    %104 = vector.broadcast %cst_40 : f32 to vector<8x32xf32>
    %105 = arith.subf %104, %98 : vector<8x32xf32>
    %106 = arith.mulf %105, %103 : vector<8x32xf32>
    %107 = arith.mulf %98, %59 : vector<8x32xf32>
    %108 = arith.addf %106, %107 : vector<8x32xf32>
    %c1_41 = arith.constant 1 : index
    %c1_42 = arith.constant 1 : index
    %c0_43 = arith.constant 0 : index
    %c0_44 = arith.constant 0 : index
    %109 = vector.load %arg7[%c1_41, %c1_42, %c0_43, %c0_44] : memref<8x2x8x32xf32, #tpu.memory_space<vmem>>, vector<1x1x8x32xf32>
    %110 = vector.shape_cast %109 : vector<1x1x8x32xf32> to vector<8x32xf32>
    %111 = vector.shape_cast %108 : vector<8x32xf32> to vector<1x1x8x32xf32>
    tpu.vector_store %arg7[%c1_41, %c1_42, %c0_43, %c0_44], %111 {strides = array<i32>} : memref<8x2x8x32xf32, #tpu.memory_space<vmem>>, vector<1x1x8x32xf32>,
    %112 = vector.extract_strided_slice %5 {offsets = [16, 0], sizes = [8, 128], strides = [1, 1]} : vector<64x128xf32> to vector<8x128xf32>
    %cst_45 = arith.constant dense<0.000000e+00> : vector<8x128xf32>
    %113 = tpu.matmul %83, %6, %cst_45 {dimension_numbers = #tpu.dot_dimension_numbers<[1], [0], [0], [1], [0, 0, 1, 1], [], []>} : vector<8x32xf32>, vector<32x128xf32>, vector<8x128xf32> -> vector<8x128xf32>
    %114 = arith.addf %112, %113 : vector<8x128xf32>
    %115 = vector.extract_strided_slice %114 {offsets = [0, 0], sizes = [8, 64], strides = [1, 1]} : vector<8x128xf32> to vector<8x64xf32>
    %116 = arith.negf %115 : vector<8x64xf32>
    %117 = math.exp %116 : vector<8x64xf32>
    %cst_46 = arith.constant 1.000000e+00 : f32
    %118 = vector.broadcast %cst_46 : f32 to vector<8x64xf32>
    %119 = arith.addf %118, %117 : vector<8x64xf32>
    %120 = arith.divf %118, %119 : vector<8x64xf32>
    %121 = vector.extract_strided_slice %120 {offsets = [0, 0], sizes = [8, 32], strides = [1, 1]} : vector<8x64xf32> to vector<8x32xf32>
    %122 = vector.extract_strided_slice %120 {offsets = [0, 32], sizes = [8, 32], strides = [1, 1]} : vector<8x64xf32> to vector<8x32xf32>
    %123 = vector.extract_strided_slice %114 {offsets = [0, 64], sizes = [8, 32], strides = [1, 1]} : vector<8x128xf32> to vector<8x32xf32>
    %124 = vector.extract_strided_slice %114 {offsets = [0, 96], sizes = [8, 32], strides = [1, 1]} : vector<8x128xf32> to vector<8x32xf32>
    %125 = arith.mulf %121, %124 : vector<8x32xf32>
    %126 = arith.addf %123, %125 : vector<8x32xf32>
    %127 = math.tanh %126 : vector<8x32xf32>
    %cst_47 = arith.constant 1.000000e+00 : f32
    %128 = vector.broadcast %cst_47 : f32 to vector<8x32xf32>
    %129 = arith.subf %128, %122 : vector<8x32xf32>
    %130 = arith.mulf %129, %127 : vector<8x32xf32>
    %131 = arith.mulf %122, %83 : vector<8x32xf32>
    %132 = arith.addf %130, %131 : vector<8x32xf32>
    %c2 = arith.constant 2 : index
    %c0_48 = arith.constant 0 : index
    %c0_49 = arith.constant 0 : index
    %c0_50 = arith.constant 0 : index
    %133 = vector.load %arg7[%c2, %c0_48, %c0_49, %c0_50] : memref<8x2x8x32xf32, #tpu.memory_space<vmem>>, vector<1x1x8x32xf32>
    %134 = vector.shape_cast %133 : vector<1x1x8x32xf32> to vector<8x32xf32>
    %135 = vector.shape_cast %132 : vector<8x32xf32> to vector<1x1x8x32xf32>
    tpu.vector_store %arg7[%c2, %c0_48, %c0_49, %c0_50], %135 {strides = array<i32>} : memref<8x2x8x32xf32, #tpu.memory_space<vmem>>, vector<1x1x8x32xf32>,
    %136 = tpu.concatenate %132, %108 in 1 : vector<8x32xf32>, vector<8x32xf32> -> vector<8x64xf32>
    %cst_51 = arith.constant dense<0.000000e+00> : vector<8x128xf32>
    %137 = tpu.matmul %136, %8, %cst_51 {dimension_numbers = #tpu.dot_dimension_numbers<[1], [0], [0], [1], [0, 0, 1, 1], [], []>} : vector<8x64xf32>, vector<64x128xf32>, vector<8x128xf32> -> vector<8x128xf32>
    %138 = vector.broadcast %9 : vector<1x128xf32> to vector<8x128xf32>
    %139 = arith.addf %137, %138 : vector<8x128xf32>
    %140 = vector.extract_strided_slice %139 {offsets = [0, 0], sizes = [8, 64], strides = [1, 1]} : vector<8x128xf32> to vector<8x64xf32>
    %141 = arith.negf %140 : vector<8x64xf32>
    %142 = math.exp %141 : vector<8x64xf32>
    %cst_52 = arith.constant 1.000000e+00 : f32
    %143 = vector.broadcast %cst_52 : f32 to vector<8x64xf32>
    %144 = arith.addf %143, %142 : vector<8x64xf32>
    %145 = arith.divf %143, %144 : vector<8x64xf32>
    %146 = vector.extract_strided_slice %145 {offsets = [0, 0], sizes = [8, 32], strides = [1, 1]} : vector<8x64xf32> to vector<8x32xf32>
    %147 = vector.extract_strided_slice %145 {offsets = [0, 32], sizes = [8, 32], strides = [1, 1]} : vector<8x64xf32> to vector<8x32xf32>
    %148 = vector.extract_strided_slice %139 {offsets = [0, 64], sizes = [8, 32], strides = [1, 1]} : vector<8x128xf32> to vector<8x32xf32>
    %149 = vector.extract_strided_slice %139 {offsets = [0, 96], sizes = [8, 32], strides = [1, 1]} : vector<8x128xf32> to vector<8x32xf32>
    %150 = arith.mulf %146, %149 : vector<8x32xf32>
    %151 = arith.addf %148, %150 : vector<8x32xf32>
    %152 = math.tanh %151 : vector<8x32xf32>
    %cst_53 = arith.constant 1.000000e+00 : f32
    %153 = vector.broadcast %cst_53 : f32 to vector<8x32xf32>
    %154 = arith.subf %153, %147 : vector<8x32xf32>
    %155 = arith.mulf %154, %152 : vector<8x32xf32>
    %156 = arith.mulf %147, %108 : vector<8x32xf32>
    %157 = arith.addf %155, %156 : vector<8x32xf32>
    %c2_54 = arith.constant 2 : index
    %c1_55 = arith.constant 1 : index
    %c0_56 = arith.constant 0 : index
    %c0_57 = arith.constant 0 : index
    %158 = vector.load %arg7[%c2_54, %c1_55, %c0_56, %c0_57] : memref<8x2x8x32xf32, #tpu.memory_space<vmem>>, vector<1x1x8x32xf32>
    %159 = vector.shape_cast %158 : vector<1x1x8x32xf32> to vector<8x32xf32>
    %160 = vector.shape_cast %157 : vector<8x32xf32> to vector<1x1x8x32xf32>
    tpu.vector_store %arg7[%c2_54, %c1_55, %c0_56, %c0_57], %160 {strides = array<i32>} : memref<8x2x8x32xf32, #tpu.memory_space<vmem>>, vector<1x1x8x32xf32>,
    %161 = vector.extract_strided_slice %5 {offsets = [24, 0], sizes = [8, 128], strides = [1, 1]} : vector<64x128xf32> to vector<8x128xf32>
    %cst_58 = arith.constant dense<0.000000e+00> : vector<8x128xf32>
    %162 = tpu.matmul %132, %6, %cst_58 {dimension_numbers = #tpu.dot_dimension_numbers<[1], [0], [0], [1], [0, 0, 1, 1], [], []>} : vector<8x32xf32>, vector<32x128xf32>, vector<8x128xf32> -> vector<8x128xf32>
    %163 = arith.addf %161, %162 : vector<8x128xf32>
    %164 = vector.extract_strided_slice %163 {offsets = [0, 0], sizes = [8, 64], strides = [1, 1]} : vector<8x128xf32> to vector<8x64xf32>
    %165 = arith.negf %164 : vector<8x64xf32>
    %166 = math.exp %165 : vector<8x64xf32>
    %cst_59 = arith.constant 1.000000e+00 : f32
    %167 = vector.broadcast %cst_59 : f32 to vector<8x64xf32>
    %168 = arith.addf %167, %166 : vector<8x64xf32>
    %169 = arith.divf %167, %168 : vector<8x64xf32>
    %170 = vector.extract_strided_slice %169 {offsets = [0, 0], sizes = [8, 32], strides = [1, 1]} : vector<8x64xf32> to vector<8x32xf32>
    %171 = vector.extract_strided_slice %169 {offsets = [0, 32], sizes = [8, 32], strides = [1, 1]} : vector<8x64xf32> to vector<8x32xf32>
    %172 = vector.extract_strided_slice %163 {offsets = [0, 64], sizes = [8, 32], strides = [1, 1]} : vector<8x128xf32> to vector<8x32xf32>
    %173 = vector.extract_strided_slice %163 {offsets = [0, 96], sizes = [8, 32], strides = [1, 1]} : vector<8x128xf32> to vector<8x32xf32>
    %174 = arith.mulf %170, %173 : vector<8x32xf32>
    %175 = arith.addf %172, %174 : vector<8x32xf32>
    %176 = math.tanh %175 : vector<8x32xf32>
    %cst_60 = arith.constant 1.000000e+00 : f32
    %177 = vector.broadcast %cst_60 : f32 to vector<8x32xf32>
    %178 = arith.subf %177, %171 : vector<8x32xf32>
    %179 = arith.mulf %178, %176 : vector<8x32xf32>
    %180 = arith.mulf %171, %132 : vector<8x32xf32>
    %181 = arith.addf %179, %180 : vector<8x32xf32>
    %c3 = arith.constant 3 : index
    %c0_61 = arith.constant 0 : index
    %c0_62 = arith.constant 0 : index
    %c0_63 = arith.constant 0 : index
    %182 = vector.load %arg7[%c3, %c0_61, %c0_62, %c0_63] : memref<8x2x8x32xf32, #tpu.memory_space<vmem>>, vector<1x1x8x32xf32>
    %183 = vector.shape_cast %182 : vector<1x1x8x32xf32> to vector<8x32xf32>
    %184 = vector.shape_cast %181 : vector<8x32xf32> to vector<1x1x8x32xf32>
    tpu.vector_store %arg7[%c3, %c0_61, %c0_62, %c0_63], %184 {strides = array<i32>} : memref<8x2x8x32xf32, #tpu.memory_space<vmem>>, vector<1x1x8x32xf32>,
    %185 = tpu.concatenate %181, %157 in 1 : vector<8x32xf32>, vector<8x32xf32> -> vector<8x64xf32>
    %cst_64 = arith.constant dense<0.000000e+00> : vector<8x128xf32>
    %186 = tpu.matmul %185, %8, %cst_64 {dimension_numbers = #tpu.dot_dimension_numbers<[1], [0], [0], [1], [0, 0, 1, 1], [], []>} : vector<8x64xf32>, vector<64x128xf32>, vector<8x128xf32> -> vector<8x128xf32>
    %187 = vector.broadcast %9 : vector<1x128xf32> to vector<8x128xf32>
    %188 = arith.addf %186, %187 : vector<8x128xf32>
    %189 = vector.extract_strided_slice %188 {offsets = [0, 0], sizes = [8, 64], strides = [1, 1]} : vector<8x128xf32> to vector<8x64xf32>
    %190 = arith.negf %189 : vector<8x64xf32>
    %191 = math.exp %190 : vector<8x64xf32>
    %cst_65 = arith.constant 1.000000e+00 : f32
    %192 = vector.broadcast %cst_65 : f32 to vector<8x64xf32>
    %193 = arith.addf %192, %191 : vector<8x64xf32>
    %194 = arith.divf %192, %193 : vector<8x64xf32>
    %195 = vector.extract_strided_slice %194 {offsets = [0, 0], sizes = [8, 32], strides = [1, 1]} : vector<8x64xf32> to vector<8x32xf32>
    %196 = vector.extract_strided_slice %194 {offsets = [0, 32], sizes = [8, 32], strides = [1, 1]} : vector<8x64xf32> to vector<8x32xf32>
    %197 = vector.extract_strided_slice %188 {offsets = [0, 64], sizes = [8, 32], strides = [1, 1]} : vector<8x128xf32> to vector<8x32xf32>
    %198 = vector.extract_strided_slice %188 {offsets = [0, 96], sizes = [8, 32], strides = [1, 1]} : vector<8x128xf32> to vector<8x32xf32>
    %199 = arith.mulf %195, %198 : vector<8x32xf32>
    %200 = arith.addf %197, %199 : vector<8x32xf32>
    %201 = math.tanh %200 : vector<8x32xf32>
    %cst_66 = arith.constant 1.000000e+00 : f32
    %202 = vector.broadcast %cst_66 : f32 to vector<8x32xf32>
    %203 = arith.subf %202, %196 : vector<8x32xf32>
    %204 = arith.mulf %203, %201 : vector<8x32xf32>
    %205 = arith.mulf %196, %157 : vector<8x32xf32>
    %206 = arith.addf %204, %205 : vector<8x32xf32>
    %c3_67 = arith.constant 3 : index
    %c1_68 = arith.constant 1 : index
    %c0_69 = arith.constant 0 : index
    %c0_70 = arith.constant 0 : index
    %207 = vector.load %arg7[%c3_67, %c1_68, %c0_69, %c0_70] : memref<8x2x8x32xf32, #tpu.memory_space<vmem>>, vector<1x1x8x32xf32>
    %208 = vector.shape_cast %207 : vector<1x1x8x32xf32> to vector<8x32xf32>
    %209 = vector.shape_cast %206 : vector<8x32xf32> to vector<1x1x8x32xf32>
    tpu.vector_store %arg7[%c3_67, %c1_68, %c0_69, %c0_70], %209 {strides = array<i32>} : memref<8x2x8x32xf32, #tpu.memory_space<vmem>>, vector<1x1x8x32xf32>,
    %210 = vector.extract_strided_slice %5 {offsets = [32, 0], sizes = [8, 128], strides = [1, 1]} : vector<64x128xf32> to vector<8x128xf32>
    %cst_71 = arith.constant dense<0.000000e+00> : vector<8x128xf32>
    %211 = tpu.matmul %181, %6, %cst_71 {dimension_numbers = #tpu.dot_dimension_numbers<[1], [0], [0], [1], [0, 0, 1, 1], [], []>} : vector<8x32xf32>, vector<32x128xf32>, vector<8x128xf32> -> vector<8x128xf32>
    %212 = arith.addf %210, %211 : vector<8x128xf32>
    %213 = vector.extract_strided_slice %212 {offsets = [0, 0], sizes = [8, 64], strides = [1, 1]} : vector<8x128xf32> to vector<8x64xf32>
    %214 = arith.negf %213 : vector<8x64xf32>
    %215 = math.exp %214 : vector<8x64xf32>
    %cst_72 = arith.constant 1.000000e+00 : f32
    %216 = vector.broadcast %cst_72 : f32 to vector<8x64xf32>
    %217 = arith.addf %216, %215 : vector<8x64xf32>
    %218 = arith.divf %216, %217 : vector<8x64xf32>
    %219 = vector.extract_strided_slice %218 {offsets = [0, 0], sizes = [8, 32], strides = [1, 1]} : vector<8x64xf32> to vector<8x32xf32>
    %220 = vector.extract_strided_slice %218 {offsets = [0, 32], sizes = [8, 32], strides = [1, 1]} : vector<8x64xf32> to vector<8x32xf32>
    %221 = vector.extract_strided_slice %212 {offsets = [0, 64], sizes = [8, 32], strides = [1, 1]} : vector<8x128xf32> to vector<8x32xf32>
    %222 = vector.extract_strided_slice %212 {offsets = [0, 96], sizes = [8, 32], strides = [1, 1]} : vector<8x128xf32> to vector<8x32xf32>
    %223 = arith.mulf %219, %222 : vector<8x32xf32>
    %224 = arith.addf %221, %223 : vector<8x32xf32>
    %225 = math.tanh %224 : vector<8x32xf32>
    %cst_73 = arith.constant 1.000000e+00 : f32
    %226 = vector.broadcast %cst_73 : f32 to vector<8x32xf32>
    %227 = arith.subf %226, %220 : vector<8x32xf32>
    %228 = arith.mulf %227, %225 : vector<8x32xf32>
    %229 = arith.mulf %220, %181 : vector<8x32xf32>
    %230 = arith.addf %228, %229 : vector<8x32xf32>
    %c4 = arith.constant 4 : index
    %c0_74 = arith.constant 0 : index
    %c0_75 = arith.constant 0 : index
    %c0_76 = arith.constant 0 : index
    %231 = vector.load %arg7[%c4, %c0_74, %c0_75, %c0_76] : memref<8x2x8x32xf32, #tpu.memory_space<vmem>>, vector<1x1x8x32xf32>
    %232 = vector.shape_cast %231 : vector<1x1x8x32xf32> to vector<8x32xf32>
    %233 = vector.shape_cast %230 : vector<8x32xf32> to vector<1x1x8x32xf32>
    tpu.vector_store %arg7[%c4, %c0_74, %c0_75, %c0_76], %233 {strides = array<i32>} : memref<8x2x8x32xf32, #tpu.memory_space<vmem>>, vector<1x1x8x32xf32>,
    %234 = tpu.concatenate %230, %206 in 1 : vector<8x32xf32>, vector<8x32xf32> -> vector<8x64xf32>
    %cst_77 = arith.constant dense<0.000000e+00> : vector<8x128xf32>
    %235 = tpu.matmul %234, %8, %cst_77 {dimension_numbers = #tpu.dot_dimension_numbers<[1], [0], [0], [1], [0, 0, 1, 1], [], []>} : vector<8x64xf32>, vector<64x128xf32>, vector<8x128xf32> -> vector<8x128xf32>
    %236 = vector.broadcast %9 : vector<1x128xf32> to vector<8x128xf32>
    %237 = arith.addf %235, %236 : vector<8x128xf32>
    %238 = vector.extract_strided_slice %237 {offsets = [0, 0], sizes = [8, 64], strides = [1, 1]} : vector<8x128xf32> to vector<8x64xf32>
    %239 = arith.negf %238 : vector<8x64xf32>
    %240 = math.exp %239 : vector<8x64xf32>
    %cst_78 = arith.constant 1.000000e+00 : f32
    %241 = vector.broadcast %cst_78 : f32 to vector<8x64xf32>
    %242 = arith.addf %241, %240 : vector<8x64xf32>
    %243 = arith.divf %241, %242 : vector<8x64xf32>
    %244 = vector.extract_strided_slice %243 {offsets = [0, 0], sizes = [8, 32], strides = [1, 1]} : vector<8x64xf32> to vector<8x32xf32>
    %245 = vector.extract_strided_slice %243 {offsets = [0, 32], sizes = [8, 32], strides = [1, 1]} : vector<8x64xf32> to vector<8x32xf32>
    %246 = vector.extract_strided_slice %237 {offsets = [0, 64], sizes = [8, 32], strides = [1, 1]} : vector<8x128xf32> to vector<8x32xf32>
    %247 = vector.extract_strided_slice %237 {offsets = [0, 96], sizes = [8, 32], strides = [1, 1]} : vector<8x128xf32> to vector<8x32xf32>
    %248 = arith.mulf %244, %247 : vector<8x32xf32>
    %249 = arith.addf %246, %248 : vector<8x32xf32>
    %250 = math.tanh %249 : vector<8x32xf32>
    %cst_79 = arith.constant 1.000000e+00 : f32
    %251 = vector.broadcast %cst_79 : f32 to vector<8x32xf32>
    %252 = arith.subf %251, %245 : vector<8x32xf32>
    %253 = arith.mulf %252, %250 : vector<8x32xf32>
    %254 = arith.mulf %245, %206 : vector<8x32xf32>
    %255 = arith.addf %253, %254 : vector<8x32xf32>
    %c4_80 = arith.constant 4 : index
    %c1_81 = arith.constant 1 : index
    %c0_82 = arith.constant 0 : index
    %c0_83 = arith.constant 0 : index
    %256 = vector.load %arg7[%c4_80, %c1_81, %c0_82, %c0_83] : memref<8x2x8x32xf32, #tpu.memory_space<vmem>>, vector<1x1x8x32xf32>
    %257 = vector.shape_cast %256 : vector<1x1x8x32xf32> to vector<8x32xf32>
    %258 = vector.shape_cast %255 : vector<8x32xf32> to vector<1x1x8x32xf32>
    tpu.vector_store %arg7[%c4_80, %c1_81, %c0_82, %c0_83], %258 {strides = array<i32>} : memref<8x2x8x32xf32, #tpu.memory_space<vmem>>, vector<1x1x8x32xf32>,
    %259 = vector.extract_strided_slice %5 {offsets = [40, 0], sizes = [8, 128], strides = [1, 1]} : vector<64x128xf32> to vector<8x128xf32>
    %cst_84 = arith.constant dense<0.000000e+00> : vector<8x128xf32>
    %260 = tpu.matmul %230, %6, %cst_84 {dimension_numbers = #tpu.dot_dimension_numbers<[1], [0], [0], [1], [0, 0, 1, 1], [], []>} : vector<8x32xf32>, vector<32x128xf32>, vector<8x128xf32> -> vector<8x128xf32>
    %261 = arith.addf %259, %260 : vector<8x128xf32>
    %262 = vector.extract_strided_slice %261 {offsets = [0, 0], sizes = [8, 64], strides = [1, 1]} : vector<8x128xf32> to vector<8x64xf32>
    %263 = arith.negf %262 : vector<8x64xf32>
    %264 = math.exp %263 : vector<8x64xf32>
    %cst_85 = arith.constant 1.000000e+00 : f32
    %265 = vector.broadcast %cst_85 : f32 to vector<8x64xf32>
    %266 = arith.addf %265, %264 : vector<8x64xf32>
    %267 = arith.divf %265, %266 : vector<8x64xf32>
    %268 = vector.extract_strided_slice %267 {offsets = [0, 0], sizes = [8, 32], strides = [1, 1]} : vector<8x64xf32> to vector<8x32xf32>
    %269 = vector.extract_strided_slice %267 {offsets = [0, 32], sizes = [8, 32], strides = [1, 1]} : vector<8x64xf32> to vector<8x32xf32>
    %270 = vector.extract_strided_slice %261 {offsets = [0, 64], sizes = [8, 32], strides = [1, 1]} : vector<8x128xf32> to vector<8x32xf32>
    %271 = vector.extract_strided_slice %261 {offsets = [0, 96], sizes = [8, 32], strides = [1, 1]} : vector<8x128xf32> to vector<8x32xf32>
    %272 = arith.mulf %268, %271 : vector<8x32xf32>
    %273 = arith.addf %270, %272 : vector<8x32xf32>
    %274 = math.tanh %273 : vector<8x32xf32>
    %cst_86 = arith.constant 1.000000e+00 : f32
    %275 = vector.broadcast %cst_86 : f32 to vector<8x32xf32>
    %276 = arith.subf %275, %269 : vector<8x32xf32>
    %277 = arith.mulf %276, %274 : vector<8x32xf32>
    %278 = arith.mulf %269, %230 : vector<8x32xf32>
    %279 = arith.addf %277, %278 : vector<8x32xf32>
    %c5 = arith.constant 5 : index
    %c0_87 = arith.constant 0 : index
    %c0_88 = arith.constant 0 : index
    %c0_89 = arith.constant 0 : index
    %280 = vector.load %arg7[%c5, %c0_87, %c0_88, %c0_89] : memref<8x2x8x32xf32, #tpu.memory_space<vmem>>, vector<1x1x8x32xf32>
    %281 = vector.shape_cast %280 : vector<1x1x8x32xf32> to vector<8x32xf32>
    %282 = vector.shape_cast %279 : vector<8x32xf32> to vector<1x1x8x32xf32>
    tpu.vector_store %arg7[%c5, %c0_87, %c0_88, %c0_89], %282 {strides = array<i32>} : memref<8x2x8x32xf32, #tpu.memory_space<vmem>>, vector<1x1x8x32xf32>,
    %283 = tpu.concatenate %279, %255 in 1 : vector<8x32xf32>, vector<8x32xf32> -> vector<8x64xf32>
    %cst_90 = arith.constant dense<0.000000e+00> : vector<8x128xf32>
    %284 = tpu.matmul %283, %8, %cst_90 {dimension_numbers = #tpu.dot_dimension_numbers<[1], [0], [0], [1], [0, 0, 1, 1], [], []>} : vector<8x64xf32>, vector<64x128xf32>, vector<8x128xf32> -> vector<8x128xf32>
    %285 = vector.broadcast %9 : vector<1x128xf32> to vector<8x128xf32>
    %286 = arith.addf %284, %285 : vector<8x128xf32>
    %287 = vector.extract_strided_slice %286 {offsets = [0, 0], sizes = [8, 64], strides = [1, 1]} : vector<8x128xf32> to vector<8x64xf32>
    %288 = arith.negf %287 : vector<8x64xf32>
    %289 = math.exp %288 : vector<8x64xf32>
    %cst_91 = arith.constant 1.000000e+00 : f32
    %290 = vector.broadcast %cst_91 : f32 to vector<8x64xf32>
    %291 = arith.addf %290, %289 : vector<8x64xf32>
    %292 = arith.divf %290, %291 : vector<8x64xf32>
    %293 = vector.extract_strided_slice %292 {offsets = [0, 0], sizes = [8, 32], strides = [1, 1]} : vector<8x64xf32> to vector<8x32xf32>
    %294 = vector.extract_strided_slice %292 {offsets = [0, 32], sizes = [8, 32], strides = [1, 1]} : vector<8x64xf32> to vector<8x32xf32>
    %295 = vector.extract_strided_slice %286 {offsets = [0, 64], sizes = [8, 32], strides = [1, 1]} : vector<8x128xf32> to vector<8x32xf32>
    %296 = vector.extract_strided_slice %286 {offsets = [0, 96], sizes = [8, 32], strides = [1, 1]} : vector<8x128xf32> to vector<8x32xf32>
    %297 = arith.mulf %293, %296 : vector<8x32xf32>
    %298 = arith.addf %295, %297 : vector<8x32xf32>
    %299 = math.tanh %298 : vector<8x32xf32>
    %cst_92 = arith.constant 1.000000e+00 : f32
    %300 = vector.broadcast %cst_92 : f32 to vector<8x32xf32>
    %301 = arith.subf %300, %294 : vector<8x32xf32>
    %302 = arith.mulf %301, %299 : vector<8x32xf32>
    %303 = arith.mulf %294, %255 : vector<8x32xf32>
    %304 = arith.addf %302, %303 : vector<8x32xf32>
    %c5_93 = arith.constant 5 : index
    %c1_94 = arith.constant 1 : index
    %c0_95 = arith.constant 0 : index
    %c0_96 = arith.constant 0 : index
    %305 = vector.load %arg7[%c5_93, %c1_94, %c0_95, %c0_96] : memref<8x2x8x32xf32, #tpu.memory_space<vmem>>, vector<1x1x8x32xf32>
    %306 = vector.shape_cast %305 : vector<1x1x8x32xf32> to vector<8x32xf32>
    %307 = vector.shape_cast %304 : vector<8x32xf32> to vector<1x1x8x32xf32>
    tpu.vector_store %arg7[%c5_93, %c1_94, %c0_95, %c0_96], %307 {strides = array<i32>} : memref<8x2x8x32xf32, #tpu.memory_space<vmem>>, vector<1x1x8x32xf32>,
    %308 = vector.extract_strided_slice %5 {offsets = [48, 0], sizes = [8, 128], strides = [1, 1]} : vector<64x128xf32> to vector<8x128xf32>
    %cst_97 = arith.constant dense<0.000000e+00> : vector<8x128xf32>
    %309 = tpu.matmul %279, %6, %cst_97 {dimension_numbers = #tpu.dot_dimension_numbers<[1], [0], [0], [1], [0, 0, 1, 1], [], []>} : vector<8x32xf32>, vector<32x128xf32>, vector<8x128xf32> -> vector<8x128xf32>
    %310 = arith.addf %308, %309 : vector<8x128xf32>
    %311 = vector.extract_strided_slice %310 {offsets = [0, 0], sizes = [8, 64], strides = [1, 1]} : vector<8x128xf32> to vector<8x64xf32>
    %312 = arith.negf %311 : vector<8x64xf32>
    %313 = math.exp %312 : vector<8x64xf32>
    %cst_98 = arith.constant 1.000000e+00 : f32
    %314 = vector.broadcast %cst_98 : f32 to vector<8x64xf32>
    %315 = arith.addf %314, %313 : vector<8x64xf32>
    %316 = arith.divf %314, %315 : vector<8x64xf32>
    %317 = vector.extract_strided_slice %316 {offsets = [0, 0], sizes = [8, 32], strides = [1, 1]} : vector<8x64xf32> to vector<8x32xf32>
    %318 = vector.extract_strided_slice %316 {offsets = [0, 32], sizes = [8, 32], strides = [1, 1]} : vector<8x64xf32> to vector<8x32xf32>
    %319 = vector.extract_strided_slice %310 {offsets = [0, 64], sizes = [8, 32], strides = [1, 1]} : vector<8x128xf32> to vector<8x32xf32>
    %320 = vector.extract_strided_slice %310 {offsets = [0, 96], sizes = [8, 32], strides = [1, 1]} : vector<8x128xf32> to vector<8x32xf32>
    %321 = arith.mulf %317, %320 : vector<8x32xf32>
    %322 = arith.addf %319, %321 : vector<8x32xf32>
    %323 = math.tanh %322 : vector<8x32xf32>
    %cst_99 = arith.constant 1.000000e+00 : f32
    %324 = vector.broadcast %cst_99 : f32 to vector<8x32xf32>
    %325 = arith.subf %324, %318 : vector<8x32xf32>
    %326 = arith.mulf %325, %323 : vector<8x32xf32>
    %327 = arith.mulf %318, %279 : vector<8x32xf32>
    %328 = arith.addf %326, %327 : vector<8x32xf32>
    %c6 = arith.constant 6 : index
    %c0_100 = arith.constant 0 : index
    %c0_101 = arith.constant 0 : index
    %c0_102 = arith.constant 0 : index
    %329 = vector.load %arg7[%c6, %c0_100, %c0_101, %c0_102] : memref<8x2x8x32xf32, #tpu.memory_space<vmem>>, vector<1x1x8x32xf32>
    %330 = vector.shape_cast %329 : vector<1x1x8x32xf32> to vector<8x32xf32>
    %331 = vector.shape_cast %328 : vector<8x32xf32> to vector<1x1x8x32xf32>
    tpu.vector_store %arg7[%c6, %c0_100, %c0_101, %c0_102], %331 {strides = array<i32>} : memref<8x2x8x32xf32, #tpu.memory_space<vmem>>, vector<1x1x8x32xf32>,
    %332 = tpu.concatenate %328, %304 in 1 : vector<8x32xf32>, vector<8x32xf32> -> vector<8x64xf32>
    %cst_103 = arith.constant dense<0.000000e+00> : vector<8x128xf32>
    %333 = tpu.matmul %332, %8, %cst_103 {dimension_numbers = #tpu.dot_dimension_numbers<[1], [0], [0], [1], [0, 0, 1, 1], [], []>} : vector<8x64xf32>, vector<64x128xf32>, vector<8x128xf32> -> vector<8x128xf32>
    %334 = vector.broadcast %9 : vector<1x128xf32> to vector<8x128xf32>
    %335 = arith.addf %333, %334 : vector<8x128xf32>
    %336 = vector.extract_strided_slice %335 {offsets = [0, 0], sizes = [8, 64], strides = [1, 1]} : vector<8x128xf32> to vector<8x64xf32>
    %337 = arith.negf %336 : vector<8x64xf32>
    %338 = math.exp %337 : vector<8x64xf32>
    %cst_104 = arith.constant 1.000000e+00 : f32
    %339 = vector.broadcast %cst_104 : f32 to vector<8x64xf32>
    %340 = arith.addf %339, %338 : vector<8x64xf32>
    %341 = arith.divf %339, %340 : vector<8x64xf32>
    %342 = vector.extract_strided_slice %341 {offsets = [0, 0], sizes = [8, 32], strides = [1, 1]} : vector<8x64xf32> to vector<8x32xf32>
    %343 = vector.extract_strided_slice %341 {offsets = [0, 32], sizes = [8, 32], strides = [1, 1]} : vector<8x64xf32> to vector<8x32xf32>
    %344 = vector.extract_strided_slice %335 {offsets = [0, 64], sizes = [8, 32], strides = [1, 1]} : vector<8x128xf32> to vector<8x32xf32>
    %345 = vector.extract_strided_slice %335 {offsets = [0, 96], sizes = [8, 32], strides = [1, 1]} : vector<8x128xf32> to vector<8x32xf32>
    %346 = arith.mulf %342, %345 : vector<8x32xf32>
    %347 = arith.addf %344, %346 : vector<8x32xf32>
    %348 = math.tanh %347 : vector<8x32xf32>
    %cst_105 = arith.constant 1.000000e+00 : f32
    %349 = vector.broadcast %cst_105 : f32 to vector<8x32xf32>
    %350 = arith.subf %349, %343 : vector<8x32xf32>
    %351 = arith.mulf %350, %348 : vector<8x32xf32>
    %352 = arith.mulf %343, %304 : vector<8x32xf32>
    %353 = arith.addf %351, %352 : vector<8x32xf32>
    %c6_106 = arith.constant 6 : index
    %c1_107 = arith.constant 1 : index
    %c0_108 = arith.constant 0 : index
    %c0_109 = arith.constant 0 : index
    %354 = vector.load %arg7[%c6_106, %c1_107, %c0_108, %c0_109] : memref<8x2x8x32xf32, #tpu.memory_space<vmem>>, vector<1x1x8x32xf32>
    %355 = vector.shape_cast %354 : vector<1x1x8x32xf32> to vector<8x32xf32>
    %356 = vector.shape_cast %353 : vector<8x32xf32> to vector<1x1x8x32xf32>
    tpu.vector_store %arg7[%c6_106, %c1_107, %c0_108, %c0_109], %356 {strides = array<i32>} : memref<8x2x8x32xf32, #tpu.memory_space<vmem>>, vector<1x1x8x32xf32>,
    %357 = vector.extract_strided_slice %5 {offsets = [56, 0], sizes = [8, 128], strides = [1, 1]} : vector<64x128xf32> to vector<8x128xf32>
    %cst_110 = arith.constant dense<0.000000e+00> : vector<8x128xf32>
    %358 = tpu.matmul %328, %6, %cst_110 {dimension_numbers = #tpu.dot_dimension_numbers<[1], [0], [0], [1], [0, 0, 1, 1], [], []>} : vector<8x32xf32>, vector<32x128xf32>, vector<8x128xf32> -> vector<8x128xf32>
    %359 = arith.addf %357, %358 : vector<8x128xf32>
    %360 = vector.extract_strided_slice %359 {offsets = [0, 0], sizes = [8, 64], strides = [1, 1]} : vector<8x128xf32> to vector<8x64xf32>
    %361 = arith.negf %360 : vector<8x64xf32>
    %362 = math.exp %361 : vector<8x64xf32>
    %cst_111 = arith.constant 1.000000e+00 : f32
    %363 = vector.broadcast %cst_111 : f32 to vector<8x64xf32>
    %364 = arith.addf %363, %362 : vector<8x64xf32>
    %365 = arith.divf %363, %364 : vector<8x64xf32>
    %366 = vector.extract_strided_slice %365 {offsets = [0, 0], sizes = [8, 32], strides = [1, 1]} : vector<8x64xf32> to vector<8x32xf32>
    %367 = vector.extract_strided_slice %365 {offsets = [0, 32], sizes = [8, 32], strides = [1, 1]} : vector<8x64xf32> to vector<8x32xf32>
    %368 = vector.extract_strided_slice %359 {offsets = [0, 64], sizes = [8, 32], strides = [1, 1]} : vector<8x128xf32> to vector<8x32xf32>
    %369 = vector.extract_strided_slice %359 {offsets = [0, 96], sizes = [8, 32], strides = [1, 1]} : vector<8x128xf32> to vector<8x32xf32>
    %370 = arith.mulf %366, %369 : vector<8x32xf32>
    %371 = arith.addf %368, %370 : vector<8x32xf32>
    %372 = math.tanh %371 : vector<8x32xf32>
    %cst_112 = arith.constant 1.000000e+00 : f32
    %373 = vector.broadcast %cst_112 : f32 to vector<8x32xf32>
    %374 = arith.subf %373, %367 : vector<8x32xf32>
    %375 = arith.mulf %374, %372 : vector<8x32xf32>
    %376 = arith.mulf %367, %328 : vector<8x32xf32>
    %377 = arith.addf %375, %376 : vector<8x32xf32>
    %c7 = arith.constant 7 : index
    %c0_113 = arith.constant 0 : index
    %c0_114 = arith.constant 0 : index
    %c0_115 = arith.constant 0 : index
    %378 = vector.load %arg7[%c7, %c0_113, %c0_114, %c0_115] : memref<8x2x8x32xf32, #tpu.memory_space<vmem>>, vector<1x1x8x32xf32>
    %379 = vector.shape_cast %378 : vector<1x1x8x32xf32> to vector<8x32xf32>
    %380 = vector.shape_cast %377 : vector<8x32xf32> to vector<1x1x8x32xf32>
    tpu.vector_store %arg7[%c7, %c0_113, %c0_114, %c0_115], %380 {strides = array<i32>} : memref<8x2x8x32xf32, #tpu.memory_space<vmem>>, vector<1x1x8x32xf32>,
    %381 = tpu.concatenate %377, %353 in 1 : vector<8x32xf32>, vector<8x32xf32> -> vector<8x64xf32>
    %cst_116 = arith.constant dense<0.000000e+00> : vector<8x128xf32>
    %382 = tpu.matmul %381, %8, %cst_116 {dimension_numbers = #tpu.dot_dimension_numbers<[1], [0], [0], [1], [0, 0, 1, 1], [], []>} : vector<8x64xf32>, vector<64x128xf32>, vector<8x128xf32> -> vector<8x128xf32>
    %383 = vector.broadcast %9 : vector<1x128xf32> to vector<8x128xf32>
    %384 = arith.addf %382, %383 : vector<8x128xf32>
    %385 = vector.extract_strided_slice %384 {offsets = [0, 0], sizes = [8, 64], strides = [1, 1]} : vector<8x128xf32> to vector<8x64xf32>
    %386 = arith.negf %385 : vector<8x64xf32>
    %387 = math.exp %386 : vector<8x64xf32>
    %cst_117 = arith.constant 1.000000e+00 : f32
    %388 = vector.broadcast %cst_117 : f32 to vector<8x64xf32>
    %389 = arith.addf %388, %387 : vector<8x64xf32>
    %390 = arith.divf %388, %389 : vector<8x64xf32>
    %391 = vector.extract_strided_slice %390 {offsets = [0, 0], sizes = [8, 32], strides = [1, 1]} : vector<8x64xf32> to vector<8x32xf32>
    %392 = vector.extract_strided_slice %390 {offsets = [0, 32], sizes = [8, 32], strides = [1, 1]} : vector<8x64xf32> to vector<8x32xf32>
    %393 = vector.extract_strided_slice %384 {offsets = [0, 64], sizes = [8, 32], strides = [1, 1]} : vector<8x128xf32> to vector<8x32xf32>
    %394 = vector.extract_strided_slice %384 {offsets = [0, 96], sizes = [8, 32], strides = [1, 1]} : vector<8x128xf32> to vector<8x32xf32>
    %395 = arith.mulf %391, %394 : vector<8x32xf32>
    %396 = arith.addf %393, %395 : vector<8x32xf32>
    %397 = math.tanh %396 : vector<8x32xf32>
    %cst_118 = arith.constant 1.000000e+00 : f32
    %398 = vector.broadcast %cst_118 : f32 to vector<8x32xf32>
    %399 = arith.subf %398, %392 : vector<8x32xf32>
    %400 = arith.mulf %399, %397 : vector<8x32xf32>
    %401 = arith.mulf %392, %353 : vector<8x32xf32>
    %402 = arith.addf %400, %401 : vector<8x32xf32>
    %c7_119 = arith.constant 7 : index
    %c1_120 = arith.constant 1 : index
    %c0_121 = arith.constant 0 : index
    %c0_122 = arith.constant 0 : index
    %403 = vector.load %arg7[%c7_119, %c1_120, %c0_121, %c0_122] : memref<8x2x8x32xf32, #tpu.memory_space<vmem>>, vector<1x1x8x32xf32>
    %404 = vector.shape_cast %403 : vector<1x1x8x32xf32> to vector<8x32xf32>
    %405 = vector.shape_cast %402 : vector<8x32xf32> to vector<1x1x8x32xf32>
    tpu.vector_store %arg7[%c7_119, %c1_120, %c0_121, %c0_122], %405 {strides = array<i32>} : memref<8x2x8x32xf32, #tpu.memory_space<vmem>>, vector<1x1x8x32xf32>,
    return
  }
}

</mosaic_0001>

<llo_original>
// kernel: encoder_forward.1
$region0: #{encoder_forward.1}
  #allocation0 [shape = 'u32[]', space=smem, size = 0x4, offset = 0x4, fixed_abs, tag = 'smem constant byte address 0x4 - core index']
  #allocation1 [shape = 'u32[72,128]{1,0:T(1,128)}', space=vmem, size = 0x9000, scoped, tag = 'internal scratch']
  %s0 = inlined_call_operand.vmem [shape: f32[64,16], index: 0, kind: input, shape index: {}]
  %s1 = inlined_call_operand.vmem [shape: f32[2,8,32], index: 1, kind: input, shape index: {}]
  %s2 = inlined_call_operand.vmem [shape: f32[16,128], index: 2, kind: input, shape index: {}]
  %s3 = inlined_call_operand.vmem [shape: f32[32,128], index: 3, kind: input, shape index: {}]
  %s4 = inlined_call_operand.vmem [shape: f32[1,128], index: 4, kind: input, shape index: {}]
  %s5 = inlined_call_operand.vmem [shape: f32[1,64,128], index: 5, kind: input, shape index: {}]
  %s6 = inlined_call_operand.vmem [shape: f32[1,128], index: 6, kind: input, shape index: {}]
  %s7 = inlined_call_operand.vmem [shape: f32[8,2,8,32], index: 7, kind: output, shape index: {}]
  %s8 = sld [smem:[#allocation0]]
  $region38: #{encoder_forward.1} parent=0
    _
  %s10 = ssub.s32 1, %s8
  %s11 = scalar_select 0, %s10, %s8
  // Predicated region
  $region2: #{encoder_forward.1} parent=0 // pred_check
    _
  $region3: #{encoder_forward.1} parent=0 // pred_check_branch
    %13 = sbr.rel (0) target = $region5
  $region4: #{encoder_forward.1} parent=0 // pred_region
    _
  $region5: #{encoder_forward.1} parent=0 // pred_fallthru
    _
  // Predicated region
  $region6: #{encoder_forward.1} parent=0 // pred_check
    _
  $region7: #{encoder_forward.1} parent=0 // pred_check_branch
    %15 = sbr.rel (0) target = $region9
  $region8: #{encoder_forward.1} parent=0 // pred_region
    _
  $region9: #{encoder_forward.1} parent=0 // pred_fallthru
    _
  // Predicated region
  $region10: #{encoder_forward.1} parent=0 // pred_check
    _
  $region11: #{encoder_forward.1} parent=0 // pred_check_branch
    %17 = sbr.rel (0) target = $region13
  $region12: #{encoder_forward.1} parent=0 // pred_region
    _
  $region13: #{encoder_forward.1} parent=0 // pred_fallthru
    _
  // Predicated region
  $region14: #{encoder_forward.1} parent=0 // pred_check
    _
  $region15: #{encoder_forward.1} parent=0 // pred_check_branch
    %19 = sbr.rel (0) target = $region17
  $region16: #{encoder_forward.1} parent=0 // pred_region
    _
  $region17: #{encoder_forward.1} parent=0 // pred_fallthru
    _
  // Predicated region
  $region18: #{encoder_forward.1} parent=0 // pred_check
    _
  $region19: #{encoder_forward.1} parent=0 // pred_check_branch
    %21 = sbr.rel (0) target = $region21
  $region20: #{encoder_forward.1} parent=0 // pred_region
    _
  $region21: #{encoder_forward.1} parent=0 // pred_fallthru
    _
  // Predicated region
  $region22: #{encoder_forward.1} parent=0 // pred_check
    _
  $region23: #{encoder_forward.1} parent=0 // pred_check_branch
    %23 = sbr.rel (0) target = $region25
  $region24: #{encoder_forward.1} parent=0 // pred_region
    _
  $region25: #{encoder_forward.1} parent=0 // pred_fallthru
    _
  // Predicated region
  $region26: #{encoder_forward.1} parent=0 // pred_check
    _
  $region27: #{encoder_forward.1} parent=0 // pred_check_branch
    %25 = sbr.rel (0) target = $region29
  $region28: #{encoder_forward.1} parent=0 // pred_region
    _
  $region29: #{encoder_forward.1} parent=0 // pred_fallthru
    _
  %v26 = vld [vmem:[%s0] sm:$0xff]
  %v27 = vld [vmem:[%s0 + $0x8] sm:$0xff]
  %v28 = vld [vmem:[%s0 + $0x10] sm:$0xff]
  %v29 = vld [vmem:[%s0 + $0x18] sm:$0xff]
  %v30 = vld [vmem:[%s0 + $0x20] sm:$0xff]
  %v31 = vld [vmem:[%s0 + $0x28] sm:$0xff]
  %v32 = vld [vmem:[%s0 + $0x30] sm:$0xff]
  %v33 = vld [vmem:[%s0 + $0x38] sm:$0xff]
  %v34 = vld [vmem:[%s2] sm:$0xff]
  %v35 = vld [vmem:[%s2 + $0x8] sm:$0xff]
  %v36 = vld [vmem:[%s4] sm:$0x1]
  %v38 = vperm.slane %v36, 0
  %vm40 = vcmask 130048
  %v42 = vsel %vm40, %v26, 0
  %v45 = vsel %vm40, %v27, 0
  %v48 = vsel %vm40, %v28, 0
  %v51 = vsel %vm40, %v29, 0
  %v54 = vsel %vm40, %v30, 0
  %v57 = vsel %vm40, %v31, 0
  %v60 = vsel %vm40, %v32, 0
  %v63 = vsel %vm40, %v33, 0
  %65 = vmatpush.msra.mxu0 0.0
  %66 = vmatpush.msra.mxu0 0.0
  %67 = vmatpush.msra.mxu0 0.0
  %68 = vmatpush.msra.mxu0 0.0
  %69 = vmatpush.msra.mxu0 0.0
  %70 = vmatpush.msra.mxu0 0.0
  %71 = vmatpush.msra.mxu0 0.0
  %72 = vmatpush.msra.mxu0 0.0
  %73 = vmatpush.msra.mxu0 0.0
  %74 = vmatpush.msra.mxu0 0.0
  %75 = vmatpush.msra.mxu0 0.0
  %76 = vmatpush.msra.mxu0 0.0
  %77 = vmatpush.msra.mxu0 0.0
  %78 = vmatpush.msra.mxu0 0.0
  %79 = vmatpush.msra.mxu0 %v35
  %80 = vmatpush.msra.mxu0 %v34
  %81 = vmatmul.f32.gmra.mxu0 %v42
  %v82 = vpop.f32.mrf.mxu0
  %v83 = vadd.f32 %v38, %v82
  %84 = vmatmul.f32.gmra.mxu0 %v45
  %v85 = vpop.f32.mrf.mxu0
  %v86 = vadd.f32 %v38, %v85
  %87 = vmatmul.f32.gmra.mxu0 %v48
  %v88 = vpop.f32.mrf.mxu0
  %v89 = vadd.f32 %v38, %v88
  %90 = vmatmul.f32.gmra.mxu0 %v51
  %v91 = vpop.f32.mrf.mxu0
  %v92 = vadd.f32 %v38, %v91
  %93 = vmatmul.f32.gmra.mxu0 %v54
  %v94 = vpop.f32.mrf.mxu0
  %v95 = vadd.f32 %v38, %v94
  %96 = vmatmul.f32.gmra.mxu0 %v57
  %v97 = vpop.f32.mrf.mxu0
  %v98 = vadd.f32 %v38, %v97
  %99 = vmatmul.f32.gmra.mxu0 %v60
  %v100 = vpop.f32.mrf.mxu0
  %v101 = vadd.f32 %v38, %v100
  %102 = vmatmul.f32.gmra.mxu0 %v63
  %v103 = vpop.f32.mrf.mxu0
  %v104 = vadd.f32 %v38, %v103
  %105 = vdwg.mxu0
  %v106 = vld [vmem:[%s3] sm:$0xff]
  %v107 = vld [vmem:[%s3 + $0x8] sm:$0xff]
  %v108 = vld [vmem:[%s3 + $0x10] sm:$0xff]
  %v109 = vld [vmem:[%s3 + $0x18] sm:$0xff]
  %v110 = vld [vmem:[%s5] sm:$0xff]
  %v111 = vld [vmem:[%s5 + $0x8] sm:$0xff]
  %v112 = vld [vmem:[%s5 + $0x10] sm:$0xff]
  %v113 = vld [vmem:[%s5 + $0x18] sm:$0xff]
  %v114 = vld [vmem:[%s5 + $0x20] sm:$0xff]
  %v115 = vld [vmem:[%s5 + $0x28] sm:$0xff]
  %v116 = vld [vmem:[%s5 + $0x30] sm:$0xff]
  %v117 = vld [vmem:[%s5 + $0x38] sm:$0xff]
  %v118 = vld [vmem:[%s6] sm:$0x1]
  %v119 = vld [vmem:[%s1] sm:$0xff]
  %s120 = scalar_lea.vmem %s1, 8
  %v121 = vld [vmem:[%s120] sm:$0xff]
  %vm122 = vcmask 261120
  %v124 = vsel %vm122, %v119, 0
  %126 = vmatpush.msra.mxu0 0.0
  %127 = vmatpush.msra.mxu0 0.0
  %128 = vmatpush.msra.mxu0 0.0
  %129 = vmatpush.msra.mxu0 0.0
  %130 = vmatpush.msra.mxu0 0.0
  %131 = vmatpush.msra.mxu0 0.0
  %132 = vmatpush.msra.mxu0 0.0
  %133 = vmatpush.msra.mxu0 0.0
  %134 = vmatpush.msra.mxu0 0.0
  %135 = vmatpush.msra.mxu0 0.0
  %136 = vmatpush.msra.mxu0 0.0
  %137 = vmatpush.msra.mxu0 0.0
  %138 = vmatpush.msra.mxu0 %v109
  %139 = vmatpush.msra.mxu0 %v108
  %140 = vmatpush.msra.mxu0 %v107
  %141 = vmatpush.msra.mxu0 %v106
  %142 = vmatmul.f32.gmra.mxu0 %v124
  %v143 = vpop.f32.mrf.mxu0
  %v144 = vadd.f32 0.0, %v143
  %145 = vdwg.mxu0
  %v146 = vadd.f32 %v83, %v144
  %v147 = vxor.u32 %v146, 2147483648
  %v148 = vmul.f32 %v147, 1.442695
  %v149 = vpow.pop %v148
  %v150 = vadd.f32 %v149, 1.0
  %v151 = vrcp.pop %v150
  %v152 = vmul.f32 %v150, %v151
  %v153 = vsub.f32 1.0, %v152
  %v154 = vmul.f32 %v151, %v153
  %v155 = vadd.f32 %v151, %v154
  %vm156 = vweird.f32 %v150
  %vm157 = vweird.f32 %v151
  %vm158 = vmor %vm156, %vm157
  %v159 = vsel %vm158, %v151, %v155
  %v160 = vand.u32 2147483647, %v150
  %vm161 = vcmp.eq.f32.partialorder %v160, 8.507059e+37
  %v162 = vand.u32 %v150, 2147483648
  %v163 = vor.u32 1.1754944e-38, %v162
  %v164 = vsel %vm161, %v163, %v159
  %v165 = vmul.f32 1.0, %v164
  %167 = vrot.lane.b32.xlu0 %v146, 32
  %v168 = vpop.permute.xlu0 %167
  %v170 = vmul.f32 %v165, %v168
  %172 = vrot.lane.b32.xlu0 %v170, 64
  %v173 = vpop.permute.xlu0 %172
  %v175 = vadd.f32 %v146, %v173
  %v176 = vtanh.pop %v175
  %v177 = vsub.f32 1.0, %v165
  %179 = vrot.lane.b32.xlu0 %v176, 96
  %v180 = vpop.permute.xlu0 %179
  %v182 = vmul.f32 %v177, %v180
  %183 = vrot.lane.b32.xlu0 %v119, 32
  %v184 = vpop.permute.xlu0 %183
  %v186 = vmul.f32 %v165, %v184
  %v187 = vadd.f32 %v182, %v186
  %189 = vrot.lane.b32.xlu0 %v187, 96
  %v190 = vpop.permute.xlu0 %189
  %192 = vst.msk [vmem:[%s7] sm:$0xff] %vm122, %v190
  %194 = vrot.lane.b32.xlu0 %v121, 32
  %v195 = vpop.permute.xlu0 %194
  %v197 = vsel %vm122, %v190, %v195
  %v199 = vperm.slane %v118, 0
  %vm201 = vcmask 523264
  %v203 = vsel %vm201, %v197, 0
  %205 = vmatpush.msra.mxu0 0.0
  %206 = vmatpush.msra.mxu0 0.0
  %207 = vmatpush.msra.mxu0 0.0
  %208 = vmatpush.msra.mxu0 0.0
  %209 = vmatpush.msra.mxu0 0.0
  %210 = vmatpush.msra.mxu0 0.0
  %211 = vmatpush.msra.mxu0 0.0
  %212 = vmatpush.msra.mxu0 0.0
  %213 = vmatpush.msra.mxu0 %v117
  %214 = vmatpush.msra.mxu0 %v116
  %215 = vmatpush.msra.mxu0 %v115
  %216 = vmatpush.msra.mxu0 %v114
  %217 = vmatpush.msra.mxu0 %v113
  %218 = vmatpush.msra.mxu0 %v112
  %219 = vmatpush.msra.mxu0 %v111
  %220 = vmatpush.msra.mxu0 %v110
  %221 = vmatmul.f32.gmra.mxu0 %v203
  %v222 = vpop.f32.mrf.mxu0
  %v223 = vadd.f32 %v199, %v222
  %224 = vdwg.mxu0
  %v225 = vxor.u32 %v223, 2147483648
  %v226 = vmul.f32 %v225, 1.442695
  %v227 = vpow.pop %v226
  %v228 = vadd.f32 %v227, 1.0
  %v229 = vrcp.pop %v228
  %v230 = vmul.f32 %v228, %v229
  %v231 = vsub.f32 1.0, %v230
  %v232 = vmul.f32 %v229, %v231
  %v233 = vadd.f32 %v229, %v232
  %vm234 = vweird.f32 %v228
  %vm235 = vweird.f32 %v229
  %vm236 = vmor %vm234, %vm235
  %v237 = vsel %vm236, %v229, %v233
  %v238 = vand.u32 2147483647, %v228
  %vm239 = vcmp.eq.f32.partialorder %v238, 8.507059e+37
  %v240 = vand.u32 %v228, 2147483648
  %v241 = vor.u32 1.1754944e-38, %v240
  %v242 = vsel %vm239, %v241, %v237
  %v243 = vmul.f32 1.0, %v242
  %245 = vrot.lane.b32.xlu0 %v223, 32
  %v246 = vpop.permute.xlu0 %245
  %v248 = vmul.f32 %v243, %v246
  %250 = vrot.lane.b32.xlu0 %v248, 64
  %v251 = vpop.permute.xlu0 %250
  %v253 = vadd.f32 %v223, %v251
  %v254 = vtanh.pop %v253
  %v255 = vsub.f32 1.0, %v243
  %257 = vrot.lane.b32.xlu0 %v254, 96
  %v258 = vpop.permute.xlu0 %257
  %v260 = vmul.f32 %v255, %v258
  %v261 = vmul.f32 %v243, %v195
  %v262 = vadd.f32 %v260, %v261
  %264 = vrot.lane.b32.xlu0 %v262, 96
  %v265 = vpop.permute.xlu0 %264
  %s267 = scalar_lea.vmem %s7, 8
  %268 = vst.msk [vmem:[%s267] sm:$0xff] %vm122, %v265
  %v269 = vsel %vm122, %v190, 0
  %271 = vmatpush.msra.mxu0 0.0
  %272 = vmatpush.msra.mxu0 0.0
  %273 = vmatpush.msra.mxu0 0.0
  %274 = vmatpush.msra.mxu0 0.0
  %275 = vmatpush.msra.mxu0 0.0
  %276 = vmatpush.msra.mxu0 0.0
  %277 = vmatpush.msra.mxu0 0.0
  %278 = vmatpush.msra.mxu0 0.0
  %279 = vmatpush.msra.mxu0 0.0
  %280 = vmatpush.msra.mxu0 0.0
  %281 = vmatpush.msra.mxu0 0.0
  %282 = vmatpush.msra.mxu0 0.0
  %283 = vmatpush.msra.mxu0 %v109
  %284 = vmatpush.msra.mxu0 %v108
  %285 = vmatpush.msra.mxu0 %v107
  %286 = vmatpush.msra.mxu0 %v106
  %287 = vmatmul.f32.gmra.mxu0 %v269
  %v288 = vpop.f32.mrf.mxu0
  %v289 = vadd.f32 0.0, %v288
  %290 = vdwg.mxu0
  %v291 = vadd.f32 %v86, %v289
  %v292 = vxor.u32 %v291, 2147483648
  %v293 = vmul.f32 %v292, 1.442695
  %v294 = vpow.pop %v293
  %v295 = vadd.f32 %v294, 1.0
  %v296 = vrcp.pop %v295
  %v297 = vmul.f32 %v295, %v296
  %v298 = vsub.f32 1.0, %v297
  %v299 = vmul.f32 %v296, %v298
  %v300 = vadd.f32 %v296, %v299
  %vm301 = vweird.f32 %v295
  %vm302 = vweird.f32 %v296
  %vm303 = vmor %vm301, %vm302
  %v304 = vsel %vm303, %v296, %v300
  %v305 = vand.u32 2147483647, %v295
  %vm306 = vcmp.eq.f32.partialorder %v305, 8.507059e+37
  %v307 = vand.u32 %v295, 2147483648
  %v308 = vor.u32 1.1754944e-38, %v307
  %v309 = vsel %vm306, %v308, %v304
  %v310 = vmul.f32 1.0, %v309
  %312 = vrot.lane.b32.xlu0 %v291, 32
  %v313 = vpop.permute.xlu0 %312
  %v315 = vmul.f32 %v310, %v313
  %317 = vrot.lane.b32.xlu0 %v315, 64
  %v318 = vpop.permute.xlu0 %317
  %v320 = vadd.f32 %v291, %v318
  %v321 = vtanh.pop %v320
  %v322 = vsub.f32 1.0, %v310
  %324 = vrot.lane.b32.xlu0 %v321, 96
  %v325 = vpop.permute.xlu0 %324
  %v327 = vmul.f32 %v322, %v325
  %v328 = vmul.f32 %v310, %v187
  %v329 = vadd.f32 %v327, %v328
  %331 = vrot.lane.b32.xlu0 %v329, 96
  %v332 = vpop.permute.xlu0 %331
  %s334 = scalar_lea.vmem %s7, 16
  %335 = vst.msk [vmem:[%s334] sm:$0xff] %vm122, %v332
  %v336 = vsel %vm122, %v332, %v262
  %v338 = vsel %vm201, %v336, 0
  %340 = vmatpush.msra.mxu0 0.0
  %341 = vmatpush.msra.mxu0 0.0
  %342 = vmatpush.msra.mxu0 0.0
  %343 = vmatpush.msra.mxu0 0.0
  %344 = vmatpush.msra.mxu0 0.0
  %345 = vmatpush.msra.mxu0 0.0
  %346 = vmatpush.msra.mxu0 0.0
  %347 = vmatpush.msra.mxu0 0.0
  %348 = vmatpush.msra.mxu0 %v117
  %349 = vmatpush.msra.mxu0 %v116
  %350 = vmatpush.msra.mxu0 %v115
  %351 = vmatpush.msra.mxu0 %v114
  %352 = vmatpush.msra.mxu0 %v113
  %353 = vmatpush.msra.mxu0 %v112
  %354 = vmatpush.msra.mxu0 %v111
  %355 = vmatpush.msra.mxu0 %v110
  %356 = vmatmul.f32.gmra.mxu0 %v338
  %v357 = vpop.f32.mrf.mxu0
  %v358 = vadd.f32 %v199, %v357
  %359 = vdwg.mxu0
  %v360 = vxor.u32 %v358, 2147483648
  %v361 = vmul.f32 %v360, 1.442695
  %v362 = vpow.pop %v361
  %v363 = vadd.f32 %v362, 1.0
  %v364 = vrcp.pop %v363
  %v365 = vmul.f32 %v363, %v364
  %v366 = vsub.f32 1.0, %v365
  %v367 = vmul.f32 %v364, %v366
  %v368 = vadd.f32 %v364, %v367
  %vm369 = vweird.f32 %v363
  %vm370 = vweird.f32 %v364
  %vm371 = vmor %vm369, %vm370
  %v372 = vsel %vm371, %v364, %v368
  %v373 = vand.u32 2147483647, %v363
  %vm374 = vcmp.eq.f32.partialorder %v373, 8.507059e+37
  %v375 = vand.u32 %v363, 2147483648
  %v376 = vor.u32 1.1754944e-38, %v375
  %v377 = vsel %vm374, %v376, %v372
  %v378 = vmul.f32 1.0, %v377
  %380 = vrot.lane.b32.xlu0 %v358, 32
  %v381 = vpop.permute.xlu0 %380
  %v383 = vmul.f32 %v378, %v381
  %385 = vrot.lane.b32.xlu0 %v383, 64
  %v386 = vpop.permute.xlu0 %385
  %v388 = vadd.f32 %v358, %v386
  %v389 = vtanh.pop %v388
  %v390 = vsub.f32 1.0, %v378
  %392 = vrot.lane.b32.xlu0 %v389, 96
  %v393 = vpop.permute.xlu0 %392
  %v395 = vmul.f32 %v390, %v393
  %v396 = vmul.f32 %v378, %v262
  %v397 = vadd.f32 %v395, %v396
  %399 = vrot.lane.b32.xlu0 %v397, 96
  %v400 = vpop.permute.xlu0 %399
  %s402 = scalar_lea.vmem %s7, 24
  %403 = vst.msk [vmem:[%s402] sm:$0xff] %vm122, %v400
  %v404 = vsel %vm122, %v332, 0
  %406 = vmatpush.msra.mxu0 0.0
  %407 = vmatpush.msra.mxu0 0.0
  %408 = vmatpush.msra.mxu0 0.0
  %409 = vmatpush.msra.mxu0 0.0
  %410 = vmatpush.msra.mxu0 0.0
  %411 = vmatpush.msra.mxu0 0.0
  %412 = vmatpush.msra.mxu0 0.0
  %413 = vmatpush.msra.mxu0 0.0
  %414 = vmatpush.msra.mxu0 0.0
  %415 = vmatpush.msra.mxu0 0.0
  %416 = vmatpush.msra.mxu0 0.0
  %417 = vmatpush.msra.mxu0 0.0
  %418 = vmatpush.msra.mxu0 %v109
  %419 = vmatpush.msra.mxu0 %v108
  %420 = vmatpush.msra.mxu0 %v107
  %421 = vmatpush.msra.mxu0 %v106
  %422 = vmatmul.f32.gmra.mxu0 %v404
  %v423 = vpop.f32.mrf.mxu0
  %v424 = vadd.f32 0.0, %v423
  %425 = vdwg.mxu0
  %v426 = vadd.f32 %v89, %v424
  %v427 = vxor.u32 %v426, 2147483648
  %v428 = vmul.f32 %v427, 1.442695
  %v429 = vpow.pop %v428
  %v430 = vadd.f32 %v429, 1.0
  %v431 = vrcp.pop %v430
  %v432 = vmul.f32 %v430, %v431
  %v433 = vsub.f32 1.0, %v432
  %v434 = vmul.f32 %v431, %v433
  %v435 = vadd.f32 %v431, %v434
  %vm436 = vweird.f32 %v430
  %vm437 = vweird.f32 %v431
  %vm438 = vmor %vm436, %vm437
  %v439 = vsel %vm438, %v431, %v435
  %v440 = vand.u32 2147483647, %v430
  %vm441 = vcmp.eq.f32.partialorder %v440, 8.507059e+37
  %v442 = vand.u32 %v430, 2147483648
  %v443 = vor.u32 1.1754944e-38, %v442
  %v444 = vsel %vm441, %v443, %v439
  %v445 = vmul.f32 1.0, %v444
  %447 = vrot.lane.b32.xlu0 %v426, 32
  %v448 = vpop.permute.xlu0 %447
  %v450 = vmul.f32 %v445, %v448
  %452 = vrot.lane.b32.xlu0 %v450, 64
  %v453 = vpop.permute.xlu0 %452
  %v455 = vadd.f32 %v426, %v453
  %v456 = vtanh.pop %v455
  %v457 = vsub.f32 1.0, %v445
  %459 = vrot.lane.b32.xlu0 %v456, 96
  %v460 = vpop.permute.xlu0 %459
  %v462 = vmul.f32 %v457, %v460
  %v463 = vmul.f32 %v445, %v329
  %v464 = vadd.f32 %v462, %v463
  %466 = vrot.lane.b32.xlu0 %v464, 96
  %v467 = vpop.permute.xlu0 %466
  %s469 = scalar_lea.vmem %s7, 32
  %470 = vst.msk [vmem:[%s469] sm:$0xff] %vm122, %v467
  %v471 = vsel %vm122, %v467, %v397
  %v473 = vsel %vm201, %v471, 0
  %475 = vmatpush.msra.mxu0 0.0
  %476 = vmatpush.msra.mxu0 0.0
  %477 = vmatpush.msra.mxu0 0.0
  %478 = vmatpush.msra.mxu0 0.0
  %479 = vmatpush.msra.mxu0 0.0
  %480 = vmatpush.msra.mxu0 0.0
  %481 = vmatpush.msra.mxu0 0.0
  %482 = vmatpush.msra.mxu0 0.0
  %483 = vmatpush.msra.mxu0 %v117
  %484 = vmatpush.msra.mxu0 %v116
  %485 = vmatpush.msra.mxu0 %v115
  %486 = vmatpush.msra.mxu0 %v114
  %487 = vmatpush.msra.mxu0 %v113
  %488 = vmatpush.msra.mxu0 %v112
  %489 = vmatpush.msra.mxu0 %v111
  %490 = vmatpush.msra.mxu0 %v110
  %491 = vmatmul.f32.gmra.mxu0 %v473
  %v492 = vpop.f32.mrf.mxu0
  %v493 = vadd.f32 %v199, %v492
  %494 = vdwg.mxu0
  %v495 = vxor.u32 %v493, 2147483648
  %v496 = vmul.f32 %v495, 1.442695
  %v497 = vpow.pop %v496
  %v498 = vadd.f32 %v497, 1.0
  %v499 = vrcp.pop %v498
  %v500 = vmul.f32 %v498, %v499
  %v501 = vsub.f32 1.0, %v500
  %v502 = vmul.f32 %v499, %v501
  %v503 = vadd.f32 %v499, %v502
  %vm504 = vweird.f32 %v498
  %vm505 = vweird.f32 %v499
  %vm506 = vmor %vm504, %vm505
  %v507 = vsel %vm506, %v499, %v503
  %v508 = vand.u32 2147483647, %v498
  %vm509 = vcmp.eq.f32.partialorder %v508, 8.507059e+37
  %v510 = vand.u32 %v498, 2147483648
  %v511 = vor.u32 1.1754944e-38, %v510
  %v512 = vsel %vm509, %v511, %v507
  %v513 = vmul.f32 1.0, %v512
  %515 = vrot.lane.b32.xlu0 %v493, 32
  %v516 = vpop.permute.xlu0 %515
  %v518 = vmul.f32 %v513, %v516
  %520 = vrot.lane.b32.xlu0 %v518, 64
  %v521 = vpop.permute.xlu0 %520
  %v523 = vadd.f32 %v493, %v521
  %v524 = vtanh.pop %v523
  %v525 = vsub.f32 1.0, %v513
  %527 = vrot.lane.b32.xlu0 %v524, 96
  %v528 = vpop.permute.xlu0 %527
  %v530 = vmul.f32 %v525, %v528
  %v531 = vmul.f32 %v513, %v397
  %v532 = vadd.f32 %v530, %v531
  %534 = vrot.lane.b32.xlu0 %v532, 96
  %v535 = vpop.permute.xlu0 %534
  %s537 = scalar_lea.vmem %s7, 40
  %538 = vst.msk [vmem:[%s537] sm:$0xff] %vm122, %v535
  %v539 = vsel %vm122, %v467, 0
  %541 = vmatpush.msra.mxu0 0.0
  %542 = vmatpush.msra.mxu0 0.0
  %543 = vmatpush.msra.mxu0 0.0
  %544 = vmatpush.msra.mxu0 0.0
  %545 = vmatpush.msra.mxu0 0.0
  %546 = vmatpush.msra.mxu0 0.0
  %547 = vmatpush.msra.mxu0 0.0
  %548 = vmatpush.msra.mxu0 0.0
  %549 = vmatpush.msra.mxu0 0.0
  %550 = vmatpush.msra.mxu0 0.0
  %551 = vmatpush.msra.mxu0 0.0
  %552 = vmatpush.msra.mxu0 0.0
  %553 = vmatpush.msra.mxu0 %v109
  %554 = vmatpush.msra.mxu0 %v108
  %555 = vmatpush.msra.mxu0 %v107
  %556 = vmatpush.msra.mxu0 %v106
  %557 = vmatmul.f32.gmra.mxu0 %v539
  %v558 = vpop.f32.mrf.mxu0
  %v559 = vadd.f32 0.0, %v558
  %560 = vdwg.mxu0
  %v561 = vadd.f32 %v92, %v559
  %v562 = vxor.u32 %v561, 2147483648
  %v563 = vmul.f32 %v562, 1.442695
  %v564 = vpow.pop %v563
  %v565 = vadd.f32 %v564, 1.0
  %v566 = vrcp.pop %v565
  %v567 = vmul.f32 %v565, %v566
  %v568 = vsub.f32 1.0, %v567
  %v569 = vmul.f32 %v566, %v568
  %v570 = vadd.f32 %v566, %v569
  %vm571 = vweird.f32 %v565
  %vm572 = vweird.f32 %v566
  %vm573 = vmor %vm571, %vm572
  %v574 = vsel %vm573, %v566, %v570
  %v575 = vand.u32 2147483647, %v565
  %vm576 = vcmp.eq.f32.partialorder %v575, 8.507059e+37
  %v577 = vand.u32 %v565, 2147483648
  %v578 = vor.u32 1.1754944e-38, %v577
  %v579 = vsel %vm576, %v578, %v574
  %v580 = vmul.f32 1.0, %v579
  %582 = vrot.lane.b32.xlu0 %v561, 32
  %v583 = vpop.permute.xlu0 %582
  %v585 = vmul.f32 %v580, %v583
  %587 = vrot.lane.b32.xlu0 %v585, 64
  %v588 = vpop.permute.xlu0 %587
  %v590 = vadd.f32 %v561, %v588
  %v591 = vtanh.pop %v590
  %v592 = vsub.f32 1.0, %v580
  %594 = vrot.lane.b32.xlu0 %v591, 96
  %v595 = vpop.permute.xlu0 %594
  %v597 = vmul.f32 %v592, %v595
  %v598 = vmul.f32 %v580, %v464
  %v599 = vadd.f32 %v597, %v598
  %601 = vrot.lane.b32.xlu0 %v599, 96
  %v602 = vpop.permute.xlu0 %601
  %s604 = scalar_lea.vmem %s7, 48
  %605 = vst.msk [vmem:[%s604] sm:$0xff] %vm122, %v602
  %v606 = vsel %vm122, %v602, %v532
  %v608 = vsel %vm201, %v606, 0
  %610 = vmatpush.msra.mxu0 0.0
  %611 = vmatpush.msra.mxu0 0.0
  %612 = vmatpush.msra.mxu0 0.0
  %613 = vmatpush.msra.mxu0 0.0
  %614 = vmatpush.msra.mxu0 0.0
  %615 = vmatpush.msra.mxu0 0.0
  %616 = vmatpush.msra.mxu0 0.0
  %617 = vmatpush.msra.mxu0 0.0
  %618 = vmatpush.msra.mxu0 %v117
  %619 = vmatpush.msra.mxu0 %v116
  %620 = vmatpush.msra.mxu0 %v115
  %621 = vmatpush.msra.mxu0 %v114
  %622 = vmatpush.msra.mxu0 %v113
  %623 = vmatpush.msra.mxu0 %v112
  %624 = vmatpush.msra.mxu0 %v111
  %625 = vmatpush.msra.mxu0 %v110
  %626 = vmatmul.f32.gmra.mxu0 %v608
  %v627 = vpop.f32.mrf.mxu0
  %v628 = vadd.f32 %v199, %v627
  %629 = vdwg.mxu0
  %v630 = vxor.u32 %v628, 2147483648
  %v631 = vmul.f32 %v630, 1.442695
  %v632 = vpow.pop %v631
  %v633 = vadd.f32 %v632, 1.0
  %v634 = vrcp.pop %v633
  %v635 = vmul.f32 %v633, %v634
  %v636 = vsub.f32 1.0, %v635
  %v637 = vmul.f32 %v634, %v636
  %v638 = vadd.f32 %v634, %v637
  %vm639 = vweird.f32 %v633
  %vm640 = vweird.f32 %v634
  %vm641 = vmor %vm639, %vm640
  %v642 = vsel %vm641, %v634, %v638
  %v643 = vand.u32 2147483647, %v633
  %vm644 = vcmp.eq.f32.partialorder %v643, 8.507059e+37
  %v645 = vand.u32 %v633, 2147483648
  %v646 = vor.u32 1.1754944e-38, %v645
  %v647 = vsel %vm644, %v646, %v642
  %v648 = vmul.f32 1.0, %v647
  %650 = vrot.lane.b32.xlu0 %v628, 32
  %v651 = vpop.permute.xlu0 %650
  %v653 = vmul.f32 %v648, %v651
  %655 = vrot.lane.b32.xlu0 %v653, 64
  %v656 = vpop.permute.xlu0 %655
  %v658 = vadd.f32 %v628, %v656
  %v659 = vtanh.pop %v658
  %v660 = vsub.f32 1.0, %v648
  %662 = vrot.lane.b32.xlu0 %v659, 96
  %v663 = vpop.permute.xlu0 %662
  %v665 = vmul.f32 %v660, %v663
  %v666 = vmul.f32 %v648, %v532
  %v667 = vadd.f32 %v665, %v666
  %669 = vrot.lane.b32.xlu0 %v667, 96
  %v670 = vpop.permute.xlu0 %669
  %s672 = scalar_lea.vmem %s7, 56
  %673 = vst.msk [vmem:[%s672] sm:$0xff] %vm122, %v670
  %v674 = vsel %vm122, %v602, 0
  %676 = vmatpush.msra.mxu0 0.0
  %677 = vmatpush.msra.mxu0 0.0
  %678 = vmatpush.msra.mxu0 0.0
  %679 = vmatpush.msra.mxu0 0.0
  %680 = vmatpush.msra.mxu0 0.0
  %681 = vmatpush.msra.mxu0 0.0
  %682 = vmatpush.msra.mxu0 0.0
  %683 = vmatpush.msra.mxu0 0.0
  %684 = vmatpush.msra.mxu0 0.0
  %685 = vmatpush.msra.mxu0 0.0
  %686 = vmatpush.msra.mxu0 0.0
  %687 = vmatpush.msra.mxu0 0.0
  %688 = vmatpush.msra.mxu0 %v109
  %689 = vmatpush.msra.mxu0 %v108
  %690 = vmatpush.msra.mxu0 %v107
  %691 = vmatpush.msra.mxu0 %v106
  %692 = vmatmul.f32.gmra.mxu0 %v674
  %v693 = vpop.f32.mrf.mxu0
  %v694 = vadd.f32 0.0, %v693
  %695 = vdwg.mxu0
  %v696 = vadd.f32 %v95, %v694
  %v697 = vxor.u32 %v696, 2147483648
  %v698 = vmul.f32 %v697, 1.442695
  %v699 = vpow.pop %v698
  %v700 = vadd.f32 %v699, 1.0
  %v701 = vrcp.pop %v700
  %v702 = vmul.f32 %v700, %v701
  %v703 = vsub.f32 1.0, %v702
  %v704 = vmul.f32 %v701, %v703
  %v705 = vadd.f32 %v701, %v704
  %vm706 = vweird.f32 %v700
  %vm707 = vweird.f32 %v701
  %vm708 = vmor %vm706, %vm707
  %v709 = vsel %vm708, %v701, %v705
  %v710 = vand.u32 2147483647, %v700
  %vm711 = vcmp.eq.f32.partialorder %v710, 8.507059e+37
  %v712 = vand.u32 %v700, 2147483648
  %v713 = vor.u32 1.1754944e-38, %v712
  %v714 = vsel %vm711, %v713, %v709
  %v715 = vmul.f32 1.0, %v714
  %717 = vrot.lane.b32.xlu0 %v696, 32
  %v718 = vpop.permute.xlu0 %717
  %v720 = vmul.f32 %v715, %v718
  %722 = vrot.lane.b32.xlu0 %v720, 64
  %v723 = vpop.permute.xlu0 %722
  %v725 = vadd.f32 %v696, %v723
  %v726 = vtanh.pop %v725
  %v727 = vsub.f32 1.0, %v715
  %729 = vrot.lane.b32.xlu0 %v726, 96
  %v730 = vpop.permute.xlu0 %729
  %v732 = vmul.f32 %v727, %v730
  %v733 = vmul.f32 %v715, %v599
  %v734 = vadd.f32 %v732, %v733
  %736 = vrot.lane.b32.xlu0 %v734, 96
  %v737 = vpop.permute.xlu0 %736
  %s739 = scalar_lea.vmem %s7, 64
  %740 = vst.msk [vmem:[%s739] sm:$0xff] %vm122, %v737
  %v741 = vsel %vm122, %v737, %v667
  %v743 = vsel %vm201, %v741, 0
  %745 = vmatpush.msra.mxu0 0.0
  %746 = vmatpush.msra.mxu0 0.0
  %747 = vmatpush.msra.mxu0 0.0
  %748 = vmatpush.msra.mxu0 0.0
  %749 = vmatpush.msra.mxu0 0.0
  %750 = vmatpush.msra.mxu0 0.0
  %751 = vmatpush.msra.mxu0 0.0
  %752 = vmatpush.msra.mxu0 0.0
  %753 = vmatpush.msra.mxu0 %v117
  %754 = vmatpush.msra.mxu0 %v116
  %755 = vmatpush.msra.mxu0 %v115
  %756 = vmatpush.msra.mxu0 %v114
  %757 = vmatpush.msra.mxu0 %v113
  %758 = vmatpush.msra.mxu0 %v112
  %759 = vmatpush.msra.mxu0 %v111
  %760 = vmatpush.msra.mxu0 %v110
  %761 = vmatmul.f32.gmra.mxu0 %v743
  %v762 = vpop.f32.mrf.mxu0
  %v763 = vadd.f32 %v199, %v762
  %764 = vdwg.mxu0
  %v765 = vxor.u32 %v763, 2147483648
  %v766 = vmul.f32 %v765, 1.442695
  %v767 = vpow.pop %v766
  %v768 = vadd.f32 %v767, 1.0
  %v769 = vrcp.pop %v768
  %v770 = vmul.f32 %v768, %v769
  %v771 = vsub.f32 1.0, %v770
  %v772 = vmul.f32 %v769, %v771
  %v773 = vadd.f32 %v769, %v772
  %vm774 = vweird.f32 %v768
  %vm775 = vweird.f32 %v769
  %vm776 = vmor %vm774, %vm775
  %v777 = vsel %vm776, %v769, %v773
  %v778 = vand.u32 2147483647, %v768
  %vm779 = vcmp.eq.f32.partialorder %v778, 8.507059e+37
  %v780 = vand.u32 %v768, 2147483648
  %v781 = vor.u32 1.1754944e-38, %v780
  %v782 = vsel %vm779, %v781, %v777
  %v783 = vmul.f32 1.0, %v782
  %785 = vrot.lane.b32.xlu0 %v763, 32
  %v786 = vpop.permute.xlu0 %785
  %v788 = vmul.f32 %v783, %v786
  %790 = vrot.lane.b32.xlu0 %v788, 64
  %v791 = vpop.permute.xlu0 %790
  %v793 = vadd.f32 %v763, %v791
  %v794 = vtanh.pop %v793
  %v795 = vsub.f32 1.0, %v783
  %797 = vrot.lane.b32.xlu0 %v794, 96
  %v798 = vpop.permute.xlu0 %797
  %v800 = vmul.f32 %v795, %v798
  %v801 = vmul.f32 %v783, %v667
  %v802 = vadd.f32 %v800, %v801
  %804 = vrot.lane.b32.xlu0 %v802, 96
  %v805 = vpop.permute.xlu0 %804
  %s807 = scalar_lea.vmem %s7, 72
  %808 = vst.msk [vmem:[%s807] sm:$0xff] %vm122, %v805
  %v809 = vsel %vm122, %v737, 0
  %811 = vmatpush.msra.mxu0 0.0
  %812 = vmatpush.msra.mxu0 0.0
  %813 = vmatpush.msra.mxu0 0.0
  %814 = vmatpush.msra.mxu0 0.0
  %815 = vmatpush.msra.mxu0 0.0
  %816 = vmatpush.msra.mxu0 0.0
  %817 = vmatpush.msra.mxu0 0.0
  %818 = vmatpush.msra.mxu0 0.0
  %819 = vmatpush.msra.mxu0 0.0
  %820 = vmatpush.msra.mxu0 0.0
  %821 = vmatpush.msra.mxu0 0.0
  %822 = vmatpush.msra.mxu0 0.0
  %823 = vmatpush.msra.mxu0 %v109
  %824 = vmatpush.msra.mxu0 %v108
  %825 = vmatpush.msra.mxu0 %v107
  %826 = vmatpush.msra.mxu0 %v106
  %827 = vmatmul.f32.gmra.mxu0 %v809
  %v828 = vpop.f32.mrf.mxu0
  %v829 = vadd.f32 0.0, %v828
  %830 = vdwg.mxu0
  %v831 = vadd.f32 %v98, %v829
  %v832 = vxor.u32 %v831, 2147483648
  %v833 = vmul.f32 %v832, 1.442695
  %v834 = vpow.pop %v833
  %v835 = vadd.f32 %v834, 1.0
  %v836 = vrcp.pop %v835
  %v837 = vmul.f32 %v835, %v836
  %v838 = vsub.f32 1.0, %v837
  %v839 = vmul.f32 %v836, %v838
  %v840 = vadd.f32 %v836, %v839
  %vm841 = vweird.f32 %v835
  %vm842 = vweird.f32 %v836
  %vm843 = vmor %vm841, %vm842
  %v844 = vsel %vm843, %v836, %v840
  %v845 = vand.u32 2147483647, %v835
  %vm846 = vcmp.eq.f32.partialorder %v845, 8.507059e+37
  %v847 = vand.u32 %v835, 2147483648
  %v848 = vor.u32 1.1754944e-38, %v847
  %v849 = vsel %vm846, %v848, %v844
  %v850 = vmul.f32 1.0, %v849
  %852 = vrot.lane.b32.xlu0 %v831, 32
  %v853 = vpop.permute.xlu0 %852
  %v855 = vmul.f32 %v850, %v853
  %857 = vrot.lane.b32.xlu0 %v855, 64
  %v858 = vpop.permute.xlu0 %857
  %v860 = vadd.f32 %v831, %v858
  %v861 = vtanh.pop %v860
  %v862 = vsub.f32 1.0, %v850
  %864 = vrot.lane.b32.xlu0 %v861, 96
  %v865 = vpop.permute.xlu0 %864
  %v867 = vmul.f32 %v862, %v865
  %v868 = vmul.f32 %v850, %v734
  %v869 = vadd.f32 %v867, %v868
  %871 = vrot.lane.b32.xlu0 %v869, 96
  %v872 = vpop.permute.xlu0 %871
  %s874 = scalar_lea.vmem %s7, 80
  %875 = vst.msk [vmem:[%s874] sm:$0xff] %vm122, %v872
  %v876 = vsel %vm122, %v872, %v802
  %v878 = vsel %vm201, %v876, 0
  %880 = vmatpush.msra.mxu0 0.0
  %881 = vmatpush.msra.mxu0 0.0
  %882 = vmatpush.msra.mxu0 0.0
  %883 = vmatpush.msra.mxu0 0.0
  %884 = vmatpush.msra.mxu0 0.0
  %885 = vmatpush.msra.mxu0 0.0
  %886 = vmatpush.msra.mxu0 0.0
  %887 = vmatpush.msra.mxu0 0.0
  %888 = vmatpush.msra.mxu0 %v117
  %889 = vmatpush.msra.mxu0 %v116
  %890 = vmatpush.msra.mxu0 %v115
  %891 = vmatpush.msra.mxu0 %v114
  %892 = vmatpush.msra.mxu0 %v113
  %893 = vmatpush.msra.mxu0 %v112
  %894 = vmatpush.msra.mxu0 %v111
  %895 = vmatpush.msra.mxu0 %v110
  %896 = vmatmul.f32.gmra.mxu0 %v878
  %v897 = vpop.f32.mrf.mxu0
  %v898 = vadd.f32 %v199, %v897
  %899 = vdwg.mxu0
  %v900 = vxor.u32 %v898, 2147483648
  %v901 = vmul.f32 %v900, 1.442695
  %v902 = vpow.pop %v901
  %v903 = vadd.f32 %v902, 1.0
  %v904 = vrcp.pop %v903
  %v905 = vmul.f32 %v903, %v904
  %v906 = vsub.f32 1.0, %v905
  %v907 = vmul.f32 %v904, %v906
  %v908 = vadd.f32 %v904, %v907
  %vm909 = vweird.f32 %v903
  %vm910 = vweird.f32 %v904
  %vm911 = vmor %vm909, %vm910
  %v912 = vsel %vm911, %v904, %v908
  %v913 = vand.u32 2147483647, %v903
  %vm914 = vcmp.eq.f32.partialorder %v913, 8.507059e+37
  %v915 = vand.u32 %v903, 2147483648
  %v916 = vor.u32 1.1754944e-38, %v915
  %v917 = vsel %vm914, %v916, %v912
  %v918 = vmul.f32 1.0, %v917
  %920 = vrot.lane.b32.xlu0 %v898, 32
  %v921 = vpop.permute.xlu0 %920
  %v923 = vmul.f32 %v918, %v921
  %925 = vrot.lane.b32.xlu0 %v923, 64
  %v926 = vpop.permute.xlu0 %925
  %v928 = vadd.f32 %v898, %v926
  %v929 = vtanh.pop %v928
  %v930 = vsub.f32 1.0, %v918
  %932 = vrot.lane.b32.xlu0 %v929, 96
  %v933 = vpop.permute.xlu0 %932
  %v935 = vmul.f32 %v930, %v933
  %v936 = vmul.f32 %v918, %v802
  %v937 = vadd.f32 %v935, %v936
  %939 = vrot.lane.b32.xlu0 %v937, 96
  %v940 = vpop.permute.xlu0 %939
  %s942 = scalar_lea.vmem %s7, 88
  %943 = vst.msk [vmem:[%s942] sm:$0xff] %vm122, %v940
  %v944 = vsel %vm122, %v872, 0
  %946 = vmatpush.msra.mxu0 0.0
  %947 = vmatpush.msra.mxu0 0.0
  %948 = vmatpush.msra.mxu0 0.0
  %949 = vmatpush.msra.mxu0 0.0
  %950 = vmatpush.msra.mxu0 0.0
  %951 = vmatpush.msra.mxu0 0.0
  %952 = vmatpush.msra.mxu0 0.0
  %953 = vmatpush.msra.mxu0 0.0
  %954 = vmatpush.msra.mxu0 0.0
  %955 = vmatpush.msra.mxu0 0.0
  %956 = vmatpush.msra.mxu0 0.0
  %957 = vmatpush.msra.mxu0 0.0
  %958 = vmatpush.msra.mxu0 %v109
  %959 = vmatpush.msra.mxu0 %v108
  %960 = vmatpush.msra.mxu0 %v107
  %961 = vmatpush.msra.mxu0 %v106
  %962 = vmatmul.f32.gmra.mxu0 %v944
  %v963 = vpop.f32.mrf.mxu0
  %v964 = vadd.f32 0.0, %v963
  %965 = vdwg.mxu0
  %v966 = vadd.f32 %v101, %v964
  %v967 = vxor.u32 %v966, 2147483648
  %v968 = vmul.f32 %v967, 1.442695
  %v969 = vpow.pop %v968
  %v970 = vadd.f32 %v969, 1.0
  %v971 = vrcp.pop %v970
  %v972 = vmul.f32 %v970, %v971
  %v973 = vsub.f32 1.0, %v972
  %v974 = vmul.f32 %v971, %v973
  %v975 = vadd.f32 %v971, %v974
  %vm976 = vweird.f32 %v970
  %vm977 = vweird.f32 %v971
  %vm978 = vmor %vm976, %vm977
  %v979 = vsel %vm978, %v971, %v975
  %v980 = vand.u32 2147483647, %v970
  %vm981 = vcmp.eq.f32.partialorder %v980, 8.507059e+37
  %v982 = vand.u32 %v970, 2147483648
  %v983 = vor.u32 1.1754944e-38, %v982
  %v984 = vsel %vm981, %v983, %v979
  %v985 = vmul.f32 1.0, %v984
  %987 = vrot.lane.b32.xlu0 %v966, 32
  %v988 = vpop.permute.xlu0 %987
  %v990 = vmul.f32 %v985, %v988
  %992 = vrot.lane.b32.xlu0 %v990, 64
  %v993 = vpop.permute.xlu0 %992
  %v995 = vadd.f32 %v966, %v993
  %v996 = vtanh.pop %v995
  %v997 = vsub.f32 1.0, %v985
  %999 = vrot.lane.b32.xlu0 %v996, 96
  %v1000 = vpop.permute.xlu0 %999
  %v1002 = vmul.f32 %v997, %v1000
  %v1003 = vmul.f32 %v985, %v869
  %v1004 = vadd.f32 %v1002, %v1003
  %1006 = vrot.lane.b32.xlu0 %v1004, 96
  %v1007 = vpop.permute.xlu0 %1006
  %s1009 = scalar_lea.vmem %s7, 96
  %1010 = vst.msk [vmem:[%s1009] sm:$0xff] %vm122, %v1007
  %v1011 = vsel %vm122, %v1007, %v937
  %v1013 = vsel %vm201, %v1011, 0
  %1015 = vmatpush.msra.mxu0 0.0
  %1016 = vmatpush.msra.mxu0 0.0
  %1017 = vmatpush.msra.mxu0 0.0
  %1018 = vmatpush.msra.mxu0 0.0
  %1019 = vmatpush.msra.mxu0 0.0
  %1020 = vmatpush.msra.mxu0 0.0
  %1021 = vmatpush.msra.mxu0 0.0
  %1022 = vmatpush.msra.mxu0 0.0
  %1023 = vmatpush.msra.mxu0 %v117
  %1024 = vmatpush.msra.mxu0 %v116
  %1025 = vmatpush.msra.mxu0 %v115
  %1026 = vmatpush.msra.mxu0 %v114
  %1027 = vmatpush.msra.mxu0 %v113
  %1028 = vmatpush.msra.mxu0 %v112
  %1029 = vmatpush.msra.mxu0 %v111
  %1030 = vmatpush.msra.mxu0 %v110
  %1031 = vmatmul.f32.gmra.mxu0 %v1013
  %v1032 = vpop.f32.mrf.mxu0
  %v1033 = vadd.f32 %v199, %v1032
  %1034 = vdwg.mxu0
  %v1035 = vxor.u32 %v1033, 2147483648
  %v1036 = vmul.f32 %v1035, 1.442695
  %v1037 = vpow.pop %v1036
  %v1038 = vadd.f32 %v1037, 1.0
  %v1039 = vrcp.pop %v1038
  %v1040 = vmul.f32 %v1038, %v1039
  %v1041 = vsub.f32 1.0, %v1040
  %v1042 = vmul.f32 %v1039, %v1041
  %v1043 = vadd.f32 %v1039, %v1042
  %vm1044 = vweird.f32 %v1038
  %vm1045 = vweird.f32 %v1039
  %vm1046 = vmor %vm1044, %vm1045
  %v1047 = vsel %vm1046, %v1039, %v1043
  %v1048 = vand.u32 2147483647, %v1038
  %vm1049 = vcmp.eq.f32.partialorder %v1048, 8.507059e+37
  %v1050 = vand.u32 %v1038, 2147483648
  %v1051 = vor.u32 1.1754944e-38, %v1050
  %v1052 = vsel %vm1049, %v1051, %v1047
  %v1053 = vmul.f32 1.0, %v1052
  %1055 = vrot.lane.b32.xlu0 %v1033, 32
  %v1056 = vpop.permute.xlu0 %1055
  %v1058 = vmul.f32 %v1053, %v1056
  %1060 = vrot.lane.b32.xlu0 %v1058, 64
  %v1061 = vpop.permute.xlu0 %1060
  %v1063 = vadd.f32 %v1033, %v1061
  %v1064 = vtanh.pop %v1063
  %v1065 = vsub.f32 1.0, %v1053
  %1067 = vrot.lane.b32.xlu0 %v1064, 96
  %v1068 = vpop.permute.xlu0 %1067
  %v1070 = vmul.f32 %v1065, %v1068
  %v1071 = vmul.f32 %v1053, %v937
  %v1072 = vadd.f32 %v1070, %v1071
  %1074 = vrot.lane.b32.xlu0 %v1072, 96
  %v1075 = vpop.permute.xlu0 %1074
  %s1077 = scalar_lea.vmem %s7, 104
  %1078 = vst.msk [vmem:[%s1077] sm:$0xff] %vm122, %v1075
  %v1079 = vsel %vm122, %v1007, 0
  %1081 = vmatpush.msra.mxu0 0.0
  %1082 = vmatpush.msra.mxu0 0.0
  %1083 = vmatpush.msra.mxu0 0.0
  %1084 = vmatpush.msra.mxu0 0.0
  %1085 = vmatpush.msra.mxu0 0.0
  %1086 = vmatpush.msra.mxu0 0.0
  %1087 = vmatpush.msra.mxu0 0.0
  %1088 = vmatpush.msra.mxu0 0.0
  %1089 = vmatpush.msra.mxu0 0.0
  %1090 = vmatpush.msra.mxu0 0.0
  %1091 = vmatpush.msra.mxu0 0.0
  %1092 = vmatpush.msra.mxu0 0.0
  %1093 = vmatpush.msra.mxu0 %v109
  %1094 = vmatpush.msra.mxu0 %v108
  %1095 = vmatpush.msra.mxu0 %v107
  %1096 = vmatpush.msra.mxu0 %v106
  %1097 = vmatmul.f32.gmra.mxu0 %v1079
  %v1098 = vpop.f32.mrf.mxu0
  %v1099 = vadd.f32 0.0, %v1098
  %1100 = vdwg.mxu0
  %v1101 = vadd.f32 %v104, %v1099
  %v1102 = vxor.u32 %v1101, 2147483648
  %v1103 = vmul.f32 %v1102, 1.442695
  %v1104 = vpow.pop %v1103
  %v1105 = vadd.f32 %v1104, 1.0
  %v1106 = vrcp.pop %v1105
  %v1107 = vmul.f32 %v1105, %v1106
  %v1108 = vsub.f32 1.0, %v1107
  %v1109 = vmul.f32 %v1106, %v1108
  %v1110 = vadd.f32 %v1106, %v1109
  %vm1111 = vweird.f32 %v1105
  %vm1112 = vweird.f32 %v1106
  %vm1113 = vmor %vm1111, %vm1112
  %v1114 = vsel %vm1113, %v1106, %v1110
  %v1115 = vand.u32 2147483647, %v1105
  %vm1116 = vcmp.eq.f32.partialorder %v1115, 8.507059e+37
  %v1117 = vand.u32 %v1105, 2147483648
  %v1118 = vor.u32 1.1754944e-38, %v1117
  %v1119 = vsel %vm1116, %v1118, %v1114
  %v1120 = vmul.f32 1.0, %v1119
  %1122 = vrot.lane.b32.xlu0 %v1101, 32
  %v1123 = vpop.permute.xlu0 %1122
  %v1125 = vmul.f32 %v1120, %v1123
  %1127 = vrot.lane.b32.xlu0 %v1125, 64
  %v1128 = vpop.permute.xlu0 %1127
  %v1130 = vadd.f32 %v1101, %v1128
  %v1131 = vtanh.pop %v1130
  %v1132 = vsub.f32 1.0, %v1120
  %1134 = vrot.lane.b32.xlu0 %v1131, 96
  %v1135 = vpop.permute.xlu0 %1134
  %v1137 = vmul.f32 %v1132, %v1135
  %v1138 = vmul.f32 %v1120, %v1004
  %v1139 = vadd.f32 %v1137, %v1138
  %1141 = vrot.lane.b32.xlu0 %v1139, 96
  %v1142 = vpop.permute.xlu0 %1141
  %s1144 = scalar_lea.vmem %s7, 112
  %1145 = vst.msk [vmem:[%s1144] sm:$0xff] %vm122, %v1142
  %v1146 = vsel %vm122, %v1142, %v1072
  %v1148 = vsel %vm201, %v1146, 0
  %1150 = vmatpush.msra.mxu0 0.0
  %1151 = vmatpush.msra.mxu0 0.0
  %1152 = vmatpush.msra.mxu0 0.0
  %1153 = vmatpush.msra.mxu0 0.0
  %1154 = vmatpush.msra.mxu0 0.0
  %1155 = vmatpush.msra.mxu0 0.0
  %1156 = vmatpush.msra.mxu0 0.0
  %1157 = vmatpush.msra.mxu0 0.0
  %1158 = vmatpush.msra.mxu0 %v117
  %1159 = vmatpush.msra.mxu0 %v116
  %1160 = vmatpush.msra.mxu0 %v115
  %1161 = vmatpush.msra.mxu0 %v114
  %1162 = vmatpush.msra.mxu0 %v113
  %1163 = vmatpush.msra.mxu0 %v112
  %1164 = vmatpush.msra.mxu0 %v111
  %1165 = vmatpush.msra.mxu0 %v110
  %1166 = vmatmul.f32.gmra.mxu0 %v1148
  %v1167 = vpop.f32.mrf.mxu0
  %v1168 = vadd.f32 %v199, %v1167
  %1169 = vdwg.mxu0
  %v1170 = vxor.u32 %v1168, 2147483648
  %v1171 = vmul.f32 %v1170, 1.442695
  %v1172 = vpow.pop %v1171
  %v1173 = vadd.f32 %v1172, 1.0
  %v1174 = vrcp.pop %v1173
  %v1175 = vmul.f32 %v1173, %v1174
  %v1176 = vsub.f32 1.0, %v1175
  %v1177 = vmul.f32 %v1174, %v1176
  %v1178 = vadd.f32 %v1174, %v1177
  %vm1179 = vweird.f32 %v1173
  %vm1180 = vweird.f32 %v1174
  %vm1181 = vmor %vm1179, %vm1180
  %v1182 = vsel %vm1181, %v1174, %v1178
  %v1183 = vand.u32 2147483647, %v1173
  %vm1184 = vcmp.eq.f32.partialorder %v1183, 8.507059e+37
  %v1185 = vand.u32 %v1173, 2147483648
  %v1186 = vor.u32 1.1754944e-38, %v1185
  %v1187 = vsel %vm1184, %v1186, %v1182
  %v1188 = vmul.f32 1.0, %v1187
  %1190 = vrot.lane.b32.xlu0 %v1168, 32
  %v1191 = vpop.permute.xlu0 %1190
  %v1193 = vmul.f32 %v1188, %v1191
  %1195 = vrot.lane.b32.xlu0 %v1193, 64
  %v1196 = vpop.permute.xlu0 %1195
  %v1198 = vadd.f32 %v1168, %v1196
  %v1199 = vtanh.pop %v1198
  %v1200 = vsub.f32 1.0, %v1188
  %1202 = vrot.lane.b32.xlu0 %v1199, 96
  %v1203 = vpop.permute.xlu0 %1202
  %v1205 = vmul.f32 %v1200, %v1203
  %v1206 = vmul.f32 %v1188, %v1072
  %v1207 = vadd.f32 %v1205, %v1206
  %1209 = vrot.lane.b32.xlu0 %v1207, 96
  %v1210 = vpop.permute.xlu0 %1209
  %s1212 = scalar_lea.vmem %s7, 120
  %1213 = vst.msk [vmem:[%s1212] sm:$0xff] %vm122, %v1210
  // Predicated region
  $region30: #{encoder_forward.1} parent=0 // pred_check
    _
  $region31: #{encoder_forward.1} parent=0 // pred_check_branch
    %1215 = sbr.rel (0) target = $region33
  $region32: #{encoder_forward.1} parent=0 // pred_region
    _
  $region33: #{encoder_forward.1} parent=0 // pred_fallthru
    _
  // Predicated region
  $region34: #{encoder_forward.1} parent=0 // pred_check
    _
  $region35: #{encoder_forward.1} parent=0 // pred_check_branch
    %1217 = sbr.rel (0) target = $region37
  $region36: #{encoder_forward.1} parent=0 // pred_region
    _
  $region37: #{encoder_forward.1} parent=0 // pred_fallthru
    _

</llo_original>
